<compile_context>
chip_gen: v7x
topology: tpu7x:2x2x1
jax: 0.10.0
libtpu: 0.0.40
codegen_flags: <defaults>
</compile_context>

<pallas_src>
import functools

import jax
import jax.numpy as jnp
from jax import lax
from jax.experimental import pallas as pl
from jax.experimental.pallas import tpu as pltpu
import numpy as np

# ---- real / padded sizes and packed-slab row layout (compile-time constants) ----
E_DIM = 32                       # embedding dim (real)
H_DIM = 32                       # hidden dim (real)
H_PAD = 128                      # padded gate width (whole-vreg gate slices)
C_PAD = 128                      # padded tag lane width (lane-dense output)
G_PAD = 4 * H_PAD                # 512 gate columns, order [i, f, g, o]


def _r8(x):                      # round up to a sublane multiple
    return (x + 7) // 8 * 8


ROW_WIH  = 0                     # rows [  0,  32): W_ih^T (E_DIM, 4*H_PAD)
ROW_WHH  = ROW_WIH + _r8(E_DIM)  # rows [ 32,  64): W_hh^T (H_DIM, 4*H_PAD)
ROW_B    = ROW_WHH + _r8(H_DIM)  # row    64      : b_ih + b_hh  (1, 4*H_PAD)
ROW_WOUT = ROW_B + 8             # rows [ 72, 104): W_out^T (H_DIM, C_PAD) in cols [0,128)
ROW_BOUT = ROW_WOUT + _r8(H_DIM) # row   104      : b_out (1, C_PAD) in cols [0,128)
SLAB_ROWS = ROW_BOUT + 8         # 112 rows x 512 cols f32  ~= 224 KiB


def lstm_tagger_kernel(embeds_ref, slab_ref, out_ref, *, num_tags):
    T = embeds_ref.shape[0]

    # Parameters read from VMEM ONCE; W_hh stays register-resident across all
    # T unrolled steps (16 vregs), well under the 64-vreg budget.
    w_ih = slab_ref[pl.ds(ROW_WIH, E_DIM), :]          # (E, 4*H_PAD)
    w_hh = slab_ref[pl.ds(ROW_WHH, H_DIM), :]          # (H, 4*H_PAD)
    b    = slab_ref[pl.ds(ROW_B, 1), :]                # (1, 4*H_PAD)

    # Input projection for all timesteps at once; kept as a register value
    # ((T, 512) f32 = 4 vregs), so the loop only does static sublane picks.
    xproj = jnp.dot(embeds_ref[...], w_ih, preferred_element_type=jnp.float32) + b

    # h_0 = 0, c_0 = 0 (PyTorch nn.LSTM default); carried as register values.
    h32 = jnp.zeros((1, H_DIM), jnp.float32)           # real 32 hidden lanes
    c   = jnp.zeros((1, H_PAD), jnp.float32)           # padded lanes stay exactly 0
    hs = []

    # Statically unrolled recurrence (T is a compile-time constant).
    for t in range(T):
        gates = xproj[t:t + 1, :] + jnp.dot(
            h32, w_hh, preferred_element_type=jnp.float32)          # (1, 4*H_PAD)
        i_g = jax.nn.sigmoid(gates[:, 0 * H_PAD:1 * H_PAD])
        f_g = jax.nn.sigmoid(gates[:, 1 * H_PAD:2 * H_PAD])
        g_g = jnp.tanh(gates[:, 2 * H_PAD:3 * H_PAD])
        o_g = jax.nn.sigmoid(gates[:, 3 * H_PAD:4 * H_PAD])
        c = f_g * c + i_g * g_g                                      # padded lanes: 0
        h_full = o_g * jnp.tanh(c)                                   # (1, H_PAD)
        h32 = h_full[:, :H_DIM]                                      # (1, H) real lanes
        hs.append(h32)

    # All hidden rows stacked in registers -> hidden2tag directly (no VMEM
    # round-trip, no masked single-sublane stores).
    h_stack = jnp.concatenate(hs, axis=0)                            # (T, H)

    w_out = slab_ref[pl.ds(ROW_WOUT, H_DIM), pl.ds(0, C_PAD)]        # (H, C_PAD)
    b_out = slab_ref[pl.ds(ROW_BOUT, 1), pl.ds(0, C_PAD)]            # (1, C_PAD)
    tag_space = jnp.dot(h_stack, w_out, preferred_element_type=jnp.float32) + b_out

    # Mask padded tag lanes explicitly (robust even if a consumer ever looked
    # at the padded output), then lane-dense log_softmax over 128 lanes.
    lane = lax.broadcasted_iota(jnp.int32, (1, C_PAD), 1)
    valid = lane < num_tags
    tag_space = jnp.where(valid, tag_space, -1e30)

    m = jnp.max(tag_space, axis=1, keepdims=True)
    lse = m + jnp.log(jnp.sum(jnp.exp(tag_space - m), axis=1, keepdims=True))
    out_ref[...] = jnp.where(valid, tag_space - lse, 0.0)


def pack_param_slab(params):
    """Pack all parameters into one compact (112, 512) f32 slab (built ONCE)."""
    E = params["w_ih_t"].shape[0]
    H = params["w_hh_t"].shape[0]
    C = params["w_out_t"].shape[1]
    assert E == E_DIM and H == H_DIM and C <= C_PAD

    def gate_pad(w):
        # (rows, 4H) -> (rows, 4*H_PAD): each gate block [i,f,g,o] zero-padded
        # separately so gate k lives at columns [k*H_PAD, (k+1)*H_PAD).
        r = w.shape[0]
        w4 = w.reshape(r, 4, H)
        return jnp.pad(w4, ((0, 0), (0, 0), (0, H_PAD - H))).reshape(r, 4 * H_PAD)

    slab = jnp.zeros((SLAB_ROWS, G_PAD), jnp.float32)
    slab = slab.at[ROW_WIH:ROW_WIH + E, :].set(gate_pad(params["w_ih_t"]))
    slab = slab.at[ROW_WHH:ROW_WHH + H, :].set(gate_pad(params["w_hh_t"]))
    slab = slab.at[ROW_B:ROW_B + 1, :].set(gate_pad(params["b"]))
    slab = slab.at[ROW_WOUT:ROW_WOUT + H, :C].set(params["w_out_t"])
    slab = slab.at[ROW_BOUT:ROW_BOUT + 1, :C].set(params["b_out"])
    return slab


@functools.partial(jax.jit, static_argnums=(3,))
def lstm_tagger_forward(sentence, embedding, slab, num_tags):
    """Jitted per-call path: embedding gather + fused Pallas kernel + slice."""
    embeds = embedding[sentence].astype(jnp.float32)     # (T, E) gather (glue op)
    T = embeds.shape[0]

    vmem = pl.BlockSpec(memory_space=pltpu.MemorySpace.VMEM)
    out_padded = pl.pallas_call(
        functools.partial(lstm_tagger_kernel, num_tags=num_tags),
        out_shape=jax.ShapeDtypeStruct((T, C_PAD), jnp.float32),
        in_specs=[vmem, vmem],
        out_specs=vmem,
    )(embeds, slab)

    return out_padded[:, :num_tags]                      # (T, C)


def reference_forward(sentence, params):
    """Pure-JAX reference matching nn.LSTM semantics, for the parity check."""
    embeds = params["embedding"][sentence]
    H = params["w_hh_t"].shape[0]

    def step(carry, x_t):
        h, c = carry
        gates = x_t @ params["w_ih_t"] + h @ params["w_hh_t"] + params["b"][0]
        i = jax.nn.sigmoid(gates[0 * H:1 * H])
        f = jax.nn.sigmoid(gates[1 * H:2 * H])
        g = jnp.tanh(gates[2 * H:3 * H])
        o = jax.nn.sigmoid(gates[3 * H:4 * H])
        c = f * c + i * g
        h = o * jnp.tanh(c)
        return (h, c), h

    (h, c), hs = lax.scan(step, (jnp.zeros(H), jnp.zeros(H)), embeds)
    tag_space = hs @ params["w_out_t"] + params["b_out"][0]
    return jax.nn.log_softmax(tag_space, axis=1)


def init_params(key, embedding_dim, hidden_dim, vocab_size, target_size):
    ks = jax.random.split(key, 7)
    E, H, C = embedding_dim, hidden_dim, target_size
    s_lstm = 1.0 / np.sqrt(H)
    s_lin = 1.0 / np.sqrt(H)
    return {
        "embedding": jax.random.normal(ks[0], (vocab_size, E), jnp.float32),
        # stored pre-transposed: (E, 4H), (H, 4H); gate order [i, f, g, o]
        "w_ih_t": jax.random.uniform(ks[1], (E, 4 * H), jnp.float32, -s_lstm, s_lstm),
        "w_hh_t": jax.random.uniform(ks[2], (H, 4 * H), jnp.float32, -s_lstm, s_lstm),
        "b": (jax.random.uniform(ks[3], (1, 4 * H), jnp.float32, -s_lstm, s_lstm)
              + jax.random.uniform(ks[4], (1, 4 * H), jnp.float32, -s_lstm, s_lstm)),
        "w_out_t": jax.random.uniform(ks[5], (H, C), jnp.float32, -s_lin, s_lin),
        "b_out": jax.random.uniform(ks[6], (1, C), jnp.float32, -s_lin, s_lin),
    }


if __name__ == "__main__":
    embedding_dim = 32
    hidden_dim = 32
    vocab_size = 20
    target_size = 8
    seq_len = 8

    key = jax.random.PRNGKey(0)
    k_param, k_sent = jax.random.split(key)
    params = init_params(k_param, embedding_dim, hidden_dim, vocab_size, target_size)
    sentence = jax.random.randint(k_sent, (seq_len,), 0, vocab_size, jnp.int32)

    # Parameter packing is hoisted OUT of the per-call path (built once).
    slab = jax.block_until_ready(pack_param_slab(params))

    out = lstm_tagger_forward(sentence, params["embedding"], slab, target_size)
    out = jax.block_until_ready(out)

    ref = jax.block_until_ready(reference_forward(sentence, params))
    np.testing.assert_allclose(np.asarray(out), np.asarray(ref), rtol=1e-5, atol=1e-5)

    assert out.shape == (seq_len, target_size)
    print("KERNEL_OK")
</pallas_src>

<mosaic_0001>
module attributes {stable_mosaic.version = 11 : i64} {
  func.func @lstm_tagger_kernel(%arg0: memref<8x32xf32, #tpu.memory_space<vmem>>, %arg1: memref<112x512xf32, #tpu.memory_space<vmem>>, %arg2: memref<8x128xf32, #tpu.memory_space<vmem>>) attributes {dimension_semantics = [], scalar_prefetch = 0 : i64, scratch_operands = 0 : i64, tpu.core_type = #tpu.core_type<tc>} {
    %c0 = arith.constant 0 : index
    %c0_0 = arith.constant 0 : index
    %0 = vector.load %arg1[%c0, %c0_0] : memref<112x512xf32, #tpu.memory_space<vmem>>, vector<32x512xf32>
    %c32 = arith.constant 32 : index
    %c0_1 = arith.constant 0 : index
    %1 = vector.load %arg1[%c32, %c0_1] : memref<112x512xf32, #tpu.memory_space<vmem>>, vector<32x512xf32>
    %c64 = arith.constant 64 : index
    %c0_2 = arith.constant 0 : index
    %2 = vector.load %arg1[%c64, %c0_2] : memref<112x512xf32, #tpu.memory_space<vmem>>, vector<1x512xf32>
    %c0_3 = arith.constant 0 : index
    %c0_4 = arith.constant 0 : index
    %3 = vector.load %arg0[%c0_3, %c0_4] : memref<8x32xf32, #tpu.memory_space<vmem>>, vector<8x32xf32>
    %cst = arith.constant dense<0.000000e+00> : vector<8x512xf32>
    %4 = tpu.matmul %3, %0, %cst {dimension_numbers = #tpu.dot_dimension_numbers<[1], [0], [0], [1], [0, 0, 1, 1], [], []>} : vector<8x32xf32>, vector<32x512xf32>, vector<8x512xf32> -> vector<8x512xf32>
    %5 = vector.broadcast %2 : vector<1x512xf32> to vector<8x512xf32>
    %6 = arith.addf %4, %5 : vector<8x512xf32>
    %cst_5 = arith.constant 0.000000e+00 : f32
    %7 = vector.broadcast %cst_5 : f32 to vector<1x32xf32>
    %cst_6 = arith.constant 0.000000e+00 : f32
    %8 = vector.broadcast %cst_6 : f32 to vector<1x128xf32>
    %9 = vector.extract_strided_slice %6 {offsets = [0, 0], sizes = [1, 512], strides = [1, 1]} : vector<8x512xf32> to vector<1x512xf32>
    %cst_7 = arith.constant dense<0.000000e+00> : vector<1x512xf32>
    %10 = tpu.matmul %7, %1, %cst_7 {dimension_numbers = #tpu.dot_dimension_numbers<[1], [0], [0], [1], [0, 0, 1, 1], [], []>} : vector<1x32xf32>, vector<32x512xf32>, vector<1x512xf32> -> vector<1x512xf32>
    %11 = arith.addf %9, %10 : vector<1x512xf32>
    %12 = vector.extract_strided_slice %11 {offsets = [0, 0], sizes = [1, 128], strides = [1, 1]} : vector<1x512xf32> to vector<1x128xf32>
    %13 = arith.negf %12 : vector<1x128xf32>
    %14 = math.exp %13 : vector<1x128xf32>
    %cst_8 = arith.constant 1.000000e+00 : f32
    %15 = vector.broadcast %cst_8 : f32 to vector<1x128xf32>
    %16 = arith.addf %15, %14 : vector<1x128xf32>
    %17 = arith.divf %15, %16 : vector<1x128xf32>
    %18 = vector.extract_strided_slice %11 {offsets = [0, 128], sizes = [1, 128], strides = [1, 1]} : vector<1x512xf32> to vector<1x128xf32>
    %19 = arith.negf %18 : vector<1x128xf32>
    %20 = math.exp %19 : vector<1x128xf32>
    %cst_9 = arith.constant 1.000000e+00 : f32
    %21 = vector.broadcast %cst_9 : f32 to vector<1x128xf32>
    %22 = arith.addf %21, %20 : vector<1x128xf32>
    %23 = arith.divf %21, %22 : vector<1x128xf32>
    %24 = vector.extract_strided_slice %11 {offsets = [0, 256], sizes = [1, 128], strides = [1, 1]} : vector<1x512xf32> to vector<1x128xf32>
    %25 = math.tanh %24 : vector<1x128xf32>
    %26 = vector.extract_strided_slice %11 {offsets = [0, 384], sizes = [1, 128], strides = [1, 1]} : vector<1x512xf32> to vector<1x128xf32>
    %27 = arith.negf %26 : vector<1x128xf32>
    %28 = math.exp %27 : vector<1x128xf32>
    %cst_10 = arith.constant 1.000000e+00 : f32
    %29 = vector.broadcast %cst_10 : f32 to vector<1x128xf32>
    %30 = arith.addf %29, %28 : vector<1x128xf32>
    %31 = arith.divf %29, %30 : vector<1x128xf32>
    %32 = arith.mulf %23, %8 : vector<1x128xf32>
    %33 = arith.mulf %17, %25 : vector<1x128xf32>
    %34 = arith.addf %32, %33 : vector<1x128xf32>
    %35 = math.tanh %34 : vector<1x128xf32>
    %36 = arith.mulf %31, %35 : vector<1x128xf32>
    %37 = vector.extract_strided_slice %36 {offsets = [0, 0], sizes = [1, 32], strides = [1, 1]} : vector<1x128xf32> to vector<1x32xf32>
    %38 = vector.extract_strided_slice %6 {offsets = [1, 0], sizes = [1, 512], strides = [1, 1]} : vector<8x512xf32> to vector<1x512xf32>
    %cst_11 = arith.constant dense<0.000000e+00> : vector<1x512xf32>
    %39 = tpu.matmul %37, %1, %cst_11 {dimension_numbers = #tpu.dot_dimension_numbers<[1], [0], [0], [1], [0, 0, 1, 1], [], []>} : vector<1x32xf32>, vector<32x512xf32>, vector<1x512xf32> -> vector<1x512xf32>
    %40 = arith.addf %38, %39 : vector<1x512xf32>
    %41 = vector.extract_strided_slice %40 {offsets = [0, 0], sizes = [1, 128], strides = [1, 1]} : vector<1x512xf32> to vector<1x128xf32>
    %42 = arith.negf %41 : vector<1x128xf32>
    %43 = math.exp %42 : vector<1x128xf32>
    %cst_12 = arith.constant 1.000000e+00 : f32
    %44 = vector.broadcast %cst_12 : f32 to vector<1x128xf32>
    %45 = arith.addf %44, %43 : vector<1x128xf32>
    %46 = arith.divf %44, %45 : vector<1x128xf32>
    %47 = vector.extract_strided_slice %40 {offsets = [0, 128], sizes = [1, 128], strides = [1, 1]} : vector<1x512xf32> to vector<1x128xf32>
    %48 = arith.negf %47 : vector<1x128xf32>
    %49 = math.exp %48 : vector<1x128xf32>
    %cst_13 = arith.constant 1.000000e+00 : f32
    %50 = vector.broadcast %cst_13 : f32 to vector<1x128xf32>
    %51 = arith.addf %50, %49 : vector<1x128xf32>
    %52 = arith.divf %50, %51 : vector<1x128xf32>
    %53 = vector.extract_strided_slice %40 {offsets = [0, 256], sizes = [1, 128], strides = [1, 1]} : vector<1x512xf32> to vector<1x128xf32>
    %54 = math.tanh %53 : vector<1x128xf32>
    %55 = vector.extract_strided_slice %40 {offsets = [0, 384], sizes = [1, 128], strides = [1, 1]} : vector<1x512xf32> to vector<1x128xf32>
    %56 = arith.negf %55 : vector<1x128xf32>
    %57 = math.exp %56 : vector<1x128xf32>
    %cst_14 = arith.constant 1.000000e+00 : f32
    %58 = vector.broadcast %cst_14 : f32 to vector<1x128xf32>
    %59 = arith.addf %58, %57 : vector<1x128xf32>
    %60 = arith.divf %58, %59 : vector<1x128xf32>
    %61 = arith.mulf %52, %34 : vector<1x128xf32>
    %62 = arith.mulf %46, %54 : vector<1x128xf32>
    %63 = arith.addf %61, %62 : vector<1x128xf32>
    %64 = math.tanh %63 : vector<1x128xf32>
    %65 = arith.mulf %60, %64 : vector<1x128xf32>
    %66 = vector.extract_strided_slice %65 {offsets = [0, 0], sizes = [1, 32], strides = [1, 1]} : vector<1x128xf32> to vector<1x32xf32>
    %67 = vector.extract_strided_slice %6 {offsets = [2, 0], sizes = [1, 512], strides = [1, 1]} : vector<8x512xf32> to vector<1x512xf32>
    %cst_15 = arith.constant dense<0.000000e+00> : vector<1x512xf32>
    %68 = tpu.matmul %66, %1, %cst_15 {dimension_numbers = #tpu.dot_dimension_numbers<[1], [0], [0], [1], [0, 0, 1, 1], [], []>} : vector<1x32xf32>, vector<32x512xf32>, vector<1x512xf32> -> vector<1x512xf32>
    %69 = arith.addf %67, %68 : vector<1x512xf32>
    %70 = vector.extract_strided_slice %69 {offsets = [0, 0], sizes = [1, 128], strides = [1, 1]} : vector<1x512xf32> to vector<1x128xf32>
    %71 = arith.negf %70 : vector<1x128xf32>
    %72 = math.exp %71 : vector<1x128xf32>
    %cst_16 = arith.constant 1.000000e+00 : f32
    %73 = vector.broadcast %cst_16 : f32 to vector<1x128xf32>
    %74 = arith.addf %73, %72 : vector<1x128xf32>
    %75 = arith.divf %73, %74 : vector<1x128xf32>
    %76 = vector.extract_strided_slice %69 {offsets = [0, 128], sizes = [1, 128], strides = [1, 1]} : vector<1x512xf32> to vector<1x128xf32>
    %77 = arith.negf %76 : vector<1x128xf32>
    %78 = math.exp %77 : vector<1x128xf32>
    %cst_17 = arith.constant 1.000000e+00 : f32
    %79 = vector.broadcast %cst_17 : f32 to vector<1x128xf32>
    %80 = arith.addf %79, %78 : vector<1x128xf32>
    %81 = arith.divf %79, %80 : vector<1x128xf32>
    %82 = vector.extract_strided_slice %69 {offsets = [0, 256], sizes = [1, 128], strides = [1, 1]} : vector<1x512xf32> to vector<1x128xf32>
    %83 = math.tanh %82 : vector<1x128xf32>
    %84 = vector.extract_strided_slice %69 {offsets = [0, 384], sizes = [1, 128], strides = [1, 1]} : vector<1x512xf32> to vector<1x128xf32>
    %85 = arith.negf %84 : vector<1x128xf32>
    %86 = math.exp %85 : vector<1x128xf32>
    %cst_18 = arith.constant 1.000000e+00 : f32
    %87 = vector.broadcast %cst_18 : f32 to vector<1x128xf32>
    %88 = arith.addf %87, %86 : vector<1x128xf32>
    %89 = arith.divf %87, %88 : vector<1x128xf32>
    %90 = arith.mulf %81, %63 : vector<1x128xf32>
    %91 = arith.mulf %75, %83 : vector<1x128xf32>
    %92 = arith.addf %90, %91 : vector<1x128xf32>
    %93 = math.tanh %92 : vector<1x128xf32>
    %94 = arith.mulf %89, %93 : vector<1x128xf32>
    %95 = vector.extract_strided_slice %94 {offsets = [0, 0], sizes = [1, 32], strides = [1, 1]} : vector<1x128xf32> to vector<1x32xf32>
    %96 = vector.extract_strided_slice %6 {offsets = [3, 0], sizes = [1, 512], strides = [1, 1]} : vector<8x512xf32> to vector<1x512xf32>
    %cst_19 = arith.constant dense<0.000000e+00> : vector<1x512xf32>
    %97 = tpu.matmul %95, %1, %cst_19 {dimension_numbers = #tpu.dot_dimension_numbers<[1], [0], [0], [1], [0, 0, 1, 1], [], []>} : vector<1x32xf32>, vector<32x512xf32>, vector<1x512xf32> -> vector<1x512xf32>
    %98 = arith.addf %96, %97 : vector<1x512xf32>
    %99 = vector.extract_strided_slice %98 {offsets = [0, 0], sizes = [1, 128], strides = [1, 1]} : vector<1x512xf32> to vector<1x128xf32>
    %100 = arith.negf %99 : vector<1x128xf32>
    %101 = math.exp %100 : vector<1x128xf32>
    %cst_20 = arith.constant 1.000000e+00 : f32
    %102 = vector.broadcast %cst_20 : f32 to vector<1x128xf32>
    %103 = arith.addf %102, %101 : vector<1x128xf32>
    %104 = arith.divf %102, %103 : vector<1x128xf32>
    %105 = vector.extract_strided_slice %98 {offsets = [0, 128], sizes = [1, 128], strides = [1, 1]} : vector<1x512xf32> to vector<1x128xf32>
    %106 = arith.negf %105 : vector<1x128xf32>
    %107 = math.exp %106 : vector<1x128xf32>
    %cst_21 = arith.constant 1.000000e+00 : f32
    %108 = vector.broadcast %cst_21 : f32 to vector<1x128xf32>
    %109 = arith.addf %108, %107 : vector<1x128xf32>
    %110 = arith.divf %108, %109 : vector<1x128xf32>
    %111 = vector.extract_strided_slice %98 {offsets = [0, 256], sizes = [1, 128], strides = [1, 1]} : vector<1x512xf32> to vector<1x128xf32>
    %112 = math.tanh %111 : vector<1x128xf32>
    %113 = vector.extract_strided_slice %98 {offsets = [0, 384], sizes = [1, 128], strides = [1, 1]} : vector<1x512xf32> to vector<1x128xf32>
    %114 = arith.negf %113 : vector<1x128xf32>
    %115 = math.exp %114 : vector<1x128xf32>
    %cst_22 = arith.constant 1.000000e+00 : f32
    %116 = vector.broadcast %cst_22 : f32 to vector<1x128xf32>
    %117 = arith.addf %116, %115 : vector<1x128xf32>
    %118 = arith.divf %116, %117 : vector<1x128xf32>
    %119 = arith.mulf %110, %92 : vector<1x128xf32>
    %120 = arith.mulf %104, %112 : vector<1x128xf32>
    %121 = arith.addf %119, %120 : vector<1x128xf32>
    %122 = math.tanh %121 : vector<1x128xf32>
    %123 = arith.mulf %118, %122 : vector<1x128xf32>
    %124 = vector.extract_strided_slice %123 {offsets = [0, 0], sizes = [1, 32], strides = [1, 1]} : vector<1x128xf32> to vector<1x32xf32>
    %125 = vector.extract_strided_slice %6 {offsets = [4, 0], sizes = [1, 512], strides = [1, 1]} : vector<8x512xf32> to vector<1x512xf32>
    %cst_23 = arith.constant dense<0.000000e+00> : vector<1x512xf32>
    %126 = tpu.matmul %124, %1, %cst_23 {dimension_numbers = #tpu.dot_dimension_numbers<[1], [0], [0], [1], [0, 0, 1, 1], [], []>} : vector<1x32xf32>, vector<32x512xf32>, vector<1x512xf32> -> vector<1x512xf32>
    %127 = arith.addf %125, %126 : vector<1x512xf32>
    %128 = vector.extract_strided_slice %127 {offsets = [0, 0], sizes = [1, 128], strides = [1, 1]} : vector<1x512xf32> to vector<1x128xf32>
    %129 = arith.negf %128 : vector<1x128xf32>
    %130 = math.exp %129 : vector<1x128xf32>
    %cst_24 = arith.constant 1.000000e+00 : f32
    %131 = vector.broadcast %cst_24 : f32 to vector<1x128xf32>
    %132 = arith.addf %131, %130 : vector<1x128xf32>
    %133 = arith.divf %131, %132 : vector<1x128xf32>
    %134 = vector.extract_strided_slice %127 {offsets = [0, 128], sizes = [1, 128], strides = [1, 1]} : vector<1x512xf32> to vector<1x128xf32>
    %135 = arith.negf %134 : vector<1x128xf32>
    %136 = math.exp %135 : vector<1x128xf32>
    %cst_25 = arith.constant 1.000000e+00 : f32
    %137 = vector.broadcast %cst_25 : f32 to vector<1x128xf32>
    %138 = arith.addf %137, %136 : vector<1x128xf32>
    %139 = arith.divf %137, %138 : vector<1x128xf32>
    %140 = vector.extract_strided_slice %127 {offsets = [0, 256], sizes = [1, 128], strides = [1, 1]} : vector<1x512xf32> to vector<1x128xf32>
    %141 = math.tanh %140 : vector<1x128xf32>
    %142 = vector.extract_strided_slice %127 {offsets = [0, 384], sizes = [1, 128], strides = [1, 1]} : vector<1x512xf32> to vector<1x128xf32>
    %143 = arith.negf %142 : vector<1x128xf32>
    %144 = math.exp %143 : vector<1x128xf32>
    %cst_26 = arith.constant 1.000000e+00 : f32
    %145 = vector.broadcast %cst_26 : f32 to vector<1x128xf32>
    %146 = arith.addf %145, %144 : vector<1x128xf32>
    %147 = arith.divf %145, %146 : vector<1x128xf32>
    %148 = arith.mulf %139, %121 : vector<1x128xf32>
    %149 = arith.mulf %133, %141 : vector<1x128xf32>
    %150 = arith.addf %148, %149 : vector<1x128xf32>
    %151 = math.tanh %150 : vector<1x128xf32>
    %152 = arith.mulf %147, %151 : vector<1x128xf32>
    %153 = vector.extract_strided_slice %152 {offsets = [0, 0], sizes = [1, 32], strides = [1, 1]} : vector<1x128xf32> to vector<1x32xf32>
    %154 = vector.extract_strided_slice %6 {offsets = [5, 0], sizes = [1, 512], strides = [1, 1]} : vector<8x512xf32> to vector<1x512xf32>
    %cst_27 = arith.constant dense<0.000000e+00> : vector<1x512xf32>
    %155 = tpu.matmul %153, %1, %cst_27 {dimension_numbers = #tpu.dot_dimension_numbers<[1], [0], [0], [1], [0, 0, 1, 1], [], []>} : vector<1x32xf32>, vector<32x512xf32>, vector<1x512xf32> -> vector<1x512xf32>
    %156 = arith.addf %154, %155 : vector<1x512xf32>
    %157 = vector.extract_strided_slice %156 {offsets = [0, 0], sizes = [1, 128], strides = [1, 1]} : vector<1x512xf32> to vector<1x128xf32>
    %158 = arith.negf %157 : vector<1x128xf32>
    %159 = math.exp %158 : vector<1x128xf32>
    %cst_28 = arith.constant 1.000000e+00 : f32
    %160 = vector.broadcast %cst_28 : f32 to vector<1x128xf32>
    %161 = arith.addf %160, %159 : vector<1x128xf32>
    %162 = arith.divf %160, %161 : vector<1x128xf32>
    %163 = vector.extract_strided_slice %156 {offsets = [0, 128], sizes = [1, 128], strides = [1, 1]} : vector<1x512xf32> to vector<1x128xf32>
    %164 = arith.negf %163 : vector<1x128xf32>
    %165 = math.exp %164 : vector<1x128xf32>
    %cst_29 = arith.constant 1.000000e+00 : f32
    %166 = vector.broadcast %cst_29 : f32 to vector<1x128xf32>
    %167 = arith.addf %166, %165 : vector<1x128xf32>
    %168 = arith.divf %166, %167 : vector<1x128xf32>
    %169 = vector.extract_strided_slice %156 {offsets = [0, 256], sizes = [1, 128], strides = [1, 1]} : vector<1x512xf32> to vector<1x128xf32>
    %170 = math.tanh %169 : vector<1x128xf32>
    %171 = vector.extract_strided_slice %156 {offsets = [0, 384], sizes = [1, 128], strides = [1, 1]} : vector<1x512xf32> to vector<1x128xf32>
    %172 = arith.negf %171 : vector<1x128xf32>
    %173 = math.exp %172 : vector<1x128xf32>
    %cst_30 = arith.constant 1.000000e+00 : f32
    %174 = vector.broadcast %cst_30 : f32 to vector<1x128xf32>
    %175 = arith.addf %174, %173 : vector<1x128xf32>
    %176 = arith.divf %174, %175 : vector<1x128xf32>
    %177 = arith.mulf %168, %150 : vector<1x128xf32>
    %178 = arith.mulf %162, %170 : vector<1x128xf32>
    %179 = arith.addf %177, %178 : vector<1x128xf32>
    %180 = math.tanh %179 : vector<1x128xf32>
    %181 = arith.mulf %176, %180 : vector<1x128xf32>
    %182 = vector.extract_strided_slice %181 {offsets = [0, 0], sizes = [1, 32], strides = [1, 1]} : vector<1x128xf32> to vector<1x32xf32>
    %183 = vector.extract_strided_slice %6 {offsets = [6, 0], sizes = [1, 512], strides = [1, 1]} : vector<8x512xf32> to vector<1x512xf32>
    %cst_31 = arith.constant dense<0.000000e+00> : vector<1x512xf32>
    %184 = tpu.matmul %182, %1, %cst_31 {dimension_numbers = #tpu.dot_dimension_numbers<[1], [0], [0], [1], [0, 0, 1, 1], [], []>} : vector<1x32xf32>, vector<32x512xf32>, vector<1x512xf32> -> vector<1x512xf32>
    %185 = arith.addf %183, %184 : vector<1x512xf32>
    %186 = vector.extract_strided_slice %185 {offsets = [0, 0], sizes = [1, 128], strides = [1, 1]} : vector<1x512xf32> to vector<1x128xf32>
    %187 = arith.negf %186 : vector<1x128xf32>
    %188 = math.exp %187 : vector<1x128xf32>
    %cst_32 = arith.constant 1.000000e+00 : f32
    %189 = vector.broadcast %cst_32 : f32 to vector<1x128xf32>
    %190 = arith.addf %189, %188 : vector<1x128xf32>
    %191 = arith.divf %189, %190 : vector<1x128xf32>
    %192 = vector.extract_strided_slice %185 {offsets = [0, 128], sizes = [1, 128], strides = [1, 1]} : vector<1x512xf32> to vector<1x128xf32>
    %193 = arith.negf %192 : vector<1x128xf32>
    %194 = math.exp %193 : vector<1x128xf32>
    %cst_33 = arith.constant 1.000000e+00 : f32
    %195 = vector.broadcast %cst_33 : f32 to vector<1x128xf32>
    %196 = arith.addf %195, %194 : vector<1x128xf32>
    %197 = arith.divf %195, %196 : vector<1x128xf32>
    %198 = vector.extract_strided_slice %185 {offsets = [0, 256], sizes = [1, 128], strides = [1, 1]} : vector<1x512xf32> to vector<1x128xf32>
    %199 = math.tanh %198 : vector<1x128xf32>
    %200 = vector.extract_strided_slice %185 {offsets = [0, 384], sizes = [1, 128], strides = [1, 1]} : vector<1x512xf32> to vector<1x128xf32>
    %201 = arith.negf %200 : vector<1x128xf32>
    %202 = math.exp %201 : vector<1x128xf32>
    %cst_34 = arith.constant 1.000000e+00 : f32
    %203 = vector.broadcast %cst_34 : f32 to vector<1x128xf32>
    %204 = arith.addf %203, %202 : vector<1x128xf32>
    %205 = arith.divf %203, %204 : vector<1x128xf32>
    %206 = arith.mulf %197, %179 : vector<1x128xf32>
    %207 = arith.mulf %191, %199 : vector<1x128xf32>
    %208 = arith.addf %206, %207 : vector<1x128xf32>
    %209 = math.tanh %208 : vector<1x128xf32>
    %210 = arith.mulf %205, %209 : vector<1x128xf32>
    %211 = vector.extract_strided_slice %210 {offsets = [0, 0], sizes = [1, 32], strides = [1, 1]} : vector<1x128xf32> to vector<1x32xf32>
    %212 = vector.extract_strided_slice %6 {offsets = [7, 0], sizes = [1, 512], strides = [1, 1]} : vector<8x512xf32> to vector<1x512xf32>
    %cst_35 = arith.constant dense<0.000000e+00> : vector<1x512xf32>
    %213 = tpu.matmul %211, %1, %cst_35 {dimension_numbers = #tpu.dot_dimension_numbers<[1], [0], [0], [1], [0, 0, 1, 1], [], []>} : vector<1x32xf32>, vector<32x512xf32>, vector<1x512xf32> -> vector<1x512xf32>
    %214 = arith.addf %212, %213 : vector<1x512xf32>
    %215 = vector.extract_strided_slice %214 {offsets = [0, 0], sizes = [1, 128], strides = [1, 1]} : vector<1x512xf32> to vector<1x128xf32>
    %216 = arith.negf %215 : vector<1x128xf32>
    %217 = math.exp %216 : vector<1x128xf32>
    %cst_36 = arith.constant 1.000000e+00 : f32
    %218 = vector.broadcast %cst_36 : f32 to vector<1x128xf32>
    %219 = arith.addf %218, %217 : vector<1x128xf32>
    %220 = arith.divf %218, %219 : vector<1x128xf32>
    %221 = vector.extract_strided_slice %214 {offsets = [0, 128], sizes = [1, 128], strides = [1, 1]} : vector<1x512xf32> to vector<1x128xf32>
    %222 = arith.negf %221 : vector<1x128xf32>
    %223 = math.exp %222 : vector<1x128xf32>
    %cst_37 = arith.constant 1.000000e+00 : f32
    %224 = vector.broadcast %cst_37 : f32 to vector<1x128xf32>
    %225 = arith.addf %224, %223 : vector<1x128xf32>
    %226 = arith.divf %224, %225 : vector<1x128xf32>
    %227 = vector.extract_strided_slice %214 {offsets = [0, 256], sizes = [1, 128], strides = [1, 1]} : vector<1x512xf32> to vector<1x128xf32>
    %228 = math.tanh %227 : vector<1x128xf32>
    %229 = vector.extract_strided_slice %214 {offsets = [0, 384], sizes = [1, 128], strides = [1, 1]} : vector<1x512xf32> to vector<1x128xf32>
    %230 = arith.negf %229 : vector<1x128xf32>
    %231 = math.exp %230 : vector<1x128xf32>
    %cst_38 = arith.constant 1.000000e+00 : f32
    %232 = vector.broadcast %cst_38 : f32 to vector<1x128xf32>
    %233 = arith.addf %232, %231 : vector<1x128xf32>
    %234 = arith.divf %232, %233 : vector<1x128xf32>
    %235 = arith.mulf %226, %208 : vector<1x128xf32>
    %236 = arith.mulf %220, %228 : vector<1x128xf32>
    %237 = arith.addf %235, %236 : vector<1x128xf32>
    %238 = math.tanh %237 : vector<1x128xf32>
    %239 = arith.mulf %234, %238 : vector<1x128xf32>
    %240 = vector.extract_strided_slice %239 {offsets = [0, 0], sizes = [1, 32], strides = [1, 1]} : vector<1x128xf32> to vector<1x32xf32>
    %241 = tpu.concatenate %37, %66, %95, %124, %153, %182, %211, %240 in 0 : vector<1x32xf32>, vector<1x32xf32>, vector<1x32xf32>, vector<1x32xf32>, vector<1x32xf32>, vector<1x32xf32>, vector<1x32xf32>, vector<1x32xf32> -> vector<8x32xf32>
    %c72 = arith.constant 72 : index
    %c0_39 = arith.constant 0 : index
    %242 = vector.load %arg1[%c72, %c0_39] : memref<112x512xf32, #tpu.memory_space<vmem>>, vector<32x128xf32>
    %c104 = arith.constant 104 : index
    %c0_40 = arith.constant 0 : index
    %243 = vector.load %arg1[%c104, %c0_40] : memref<112x512xf32, #tpu.memory_space<vmem>>, vector<1x128xf32>
    %cst_41 = arith.constant dense<0.000000e+00> : vector<8x128xf32>
    %244 = tpu.matmul %241, %242, %cst_41 {dimension_numbers = #tpu.dot_dimension_numbers<[1], [0], [0], [1], [0, 0, 1, 1], [], []>} : vector<8x32xf32>, vector<32x128xf32>, vector<8x128xf32> -> vector<8x128xf32>
    %245 = vector.broadcast %243 : vector<1x128xf32> to vector<8x128xf32>
    %246 = arith.addf %244, %245 : vector<8x128xf32>
    %247 = tpu.iota {dimensions = array<i32: 1>} : vector<1x128xi32>
    %c8_i32 = arith.constant 8 : i32
    %248 = vector.broadcast %c8_i32 : i32 to vector<1x128xi32>
    %249 = arith.cmpi slt, %247, %248 : vector<1x128xi32>
    %cst_42 = arith.constant -1.000000e+30 : f32
    %250 = vector.shape_cast %249 : vector<1x128xi1> to vector<1x128xi1>
    %251 = vector.broadcast %250 : vector<1x128xi1> to vector<8x128xi1>
    %252 = vector.broadcast %cst_42 : f32 to vector<8x128xf32>
    %253 = arith.select %251, %246, %252 : vector<8x128xi1>, vector<8x128xf32>
    %cst_43 = arith.constant dense<0xFF800000> : vector<8xf32>
    %254 = vector.multi_reduction <maximumf>, %253, %cst_43 [1] : vector<8x128xf32> to vector<8xf32>
    %255 = vector.shape_cast %254 : vector<8xf32> to vector<8x1xf32>
    %256 = vector.broadcast %255 : vector<8x1xf32> to vector<8x128xf32>
    %257 = arith.subf %253, %256 : vector<8x128xf32>
    %258 = math.exp %257 : vector<8x128xf32>
    %cst_44 = arith.constant dense<0.000000e+00> : vector<8xf32>
    %259 = vector.multi_reduction <add>, %258, %cst_44 [1] : vector<8x128xf32> to vector<8xf32>
    %260 = vector.shape_cast %259 : vector<8xf32> to vector<8x1xf32>
    %261 = math.log %260 : vector<8x1xf32>
    %262 = arith.addf %255, %261 : vector<8x1xf32>
    %263 = vector.broadcast %262 : vector<8x1xf32> to vector<8x128xf32>
    %264 = arith.subf %253, %263 : vector<8x128xf32>
    %cst_45 = arith.constant 0.000000e+00 : f32
    %265 = vector.shape_cast %249 : vector<1x128xi1> to vector<1x128xi1>
    %266 = vector.broadcast %265 : vector<1x128xi1> to vector<8x128xi1>
    %267 = vector.broadcast %cst_45 : f32 to vector<8x128xf32>
    %268 = arith.select %266, %264, %267 : vector<8x128xi1>, vector<8x128xf32>
    %c0_46 = arith.constant 0 : index
    %c0_47 = arith.constant 0 : index
    %269 = vector.load %arg2[%c0_46, %c0_47] : memref<8x128xf32, #tpu.memory_space<vmem>>, vector<8x128xf32>
    tpu.vector_store %arg2[%c0_46, %c0_47], %268 {strides = array<i32>} : memref<8x128xf32, #tpu.memory_space<vmem>>, vector<8x128xf32>,
    return
  }
}

</mosaic_0001>

<llo_original>
// kernel: lstm_tagger_forward.1
$region0: #{lstm_tagger_forward.1}
  #allocation0 [shape = 'u32[]', space=smem, size = 0x4, offset = 0x4, fixed_abs, tag = 'smem constant byte address 0x4 - core index']
  #allocation1 [shape = 'u32[144,128]{1,0:T(1,128)}', space=vmem, size = 0x12000, scoped, tag = 'internal scratch']
  %s0 = inlined_call_operand.vmem [shape: f32[8,32], index: 0, kind: input, shape index: {}]
  %s1 = inlined_call_operand.hbm [shape: f32[112,512], index: 1, kind: input, shape index: {}]
  %s2 = inlined_call_operand.hbm [shape: f32[8,128], index: 2, kind: output, shape index: {}]
  %s3 = sld [smem:[#allocation0]]
  $region22: #{lstm_tagger_forward.1} parent=0
    _
  %s5 = ssub.s32 1, %s3
  %s6 = scalar_select 0, %s5, %s3
  $region1: #{lstm_tagger_forward.1} parent=0
    #allocation2 [shape = 'u8[229376]{0}', space=vmem, size = 0x38000, scoped, tag = 'input window, operand 1, single buffered']
    #allocation3 [shape = 's32[1]{0}', space=sflag, size = 0x4, scoped, tag = 'scoped memory for lstm_tagger_forward.1']
    #allocation4 [shape = 's32[1]{0}', space=sflag, size = 0x4, scoped, tag = 'scoped memory for lstm_tagger_forward.1']
    #allocation5 [shape = 'u8[4096]{0}', space=vmem, size = 0x1000, scoped, tag = 'output window, operand 0, single buffered']
    %7 = vsyncpa [#allocation3], 0
    %8 = vsyncpa [#allocation4], 0
    // Predicated region
    $region2: #{lstm_tagger_forward.1} parent=1 // pred_check
      _
    $region3: #{lstm_tagger_forward.1} parent=1 // pred_check_branch
      %10 = sbr.rel (0) target = $region5
    $region4: #{lstm_tagger_forward.1} parent=1 // pred_region
      _
    $region5: #{lstm_tagger_forward.1} parent=1 // pred_fallthru
      _
    // Predicated region
    $region6: #{lstm_tagger_forward.1} parent=1 // pred_check
      _
    $region7: #{lstm_tagger_forward.1} parent=1 // pred_check_branch
      %12 = sbr.rel (0) target = $region9
    $region8: #{lstm_tagger_forward.1} parent=1 // pred_region
      %s14 = ssub.s32 7168, 7168
      %15 = vsyncadd [#allocation3], %s14
      %s16 = sshll.u32 [#allocation2], 4
      %s17 = int_to_ptr.vmem [resolvable:$true] %s16
      %22 = dma.hbm_to_vmem [thread:$0]  %s1, 7168, %s17, [#allocation3], 512, 512, 32
    $region9: #{lstm_tagger_forward.1} parent=1 // pred_fallthru
      _
    // Predicated region
    $region10: #{lstm_tagger_forward.1} parent=1 // pred_check
      _
    $region11: #{lstm_tagger_forward.1} parent=1 // pred_check_branch
      %24 = sbr.rel (0) target = $region13
    $region12: #{lstm_tagger_forward.1} parent=1 // pred_region
      %25 = dma.done [#allocation3], 7168
    $region13: #{lstm_tagger_forward.1} parent=1 // pred_fallthru
      _
    %v26 = vld [vmem:[#allocation2] sm:$0xff]
    %v27 = vld [vmem:[#allocation2 + $0x8] sm:$0xff]
    %v28 = vld [vmem:[#allocation2 + $0x10] sm:$0xff]
    %v29 = vld [vmem:[#allocation2 + $0x18] sm:$0xff]
    %v30 = vld [vmem:[#allocation2 + $0x20] sm:$0xff]
    %v31 = vld [vmem:[#allocation2 + $0x28] sm:$0xff]
    %v32 = vld [vmem:[#allocation2 + $0x30] sm:$0xff]
    %v33 = vld [vmem:[#allocation2 + $0x38] sm:$0xff]
    %v34 = vld [vmem:[#allocation2 + $0x40] sm:$0xff]
    %v35 = vld [vmem:[#allocation2 + $0x48] sm:$0xff]
    %v36 = vld [vmem:[#allocation2 + $0x50] sm:$0xff]
    %v37 = vld [vmem:[#allocation2 + $0x58] sm:$0xff]
    %v38 = vld [vmem:[#allocation2 + $0x60] sm:$0xff]
    %v39 = vld [vmem:[#allocation2 + $0x68] sm:$0xff]
    %v40 = vld [vmem:[#allocation2 + $0x70] sm:$0xff]
    %v41 = vld [vmem:[#allocation2 + $0x78] sm:$0xff]
    %v42 = vld [vmem:[#allocation2 + $0x80] sm:$0xff]
    %v43 = vld [vmem:[#allocation2 + $0x88] sm:$0xff]
    %v44 = vld [vmem:[#allocation2 + $0x90] sm:$0xff]
    %v45 = vld [vmem:[#allocation2 + $0x98] sm:$0xff]
    %v46 = vld [vmem:[#allocation2 + $0xa0] sm:$0xff]
    %v47 = vld [vmem:[#allocation2 + $0xa8] sm:$0xff]
    %v48 = vld [vmem:[#allocation2 + $0xb0] sm:$0xff]
    %v49 = vld [vmem:[#allocation2 + $0xb8] sm:$0xff]
    %v50 = vld [vmem:[#allocation2 + $0xc0] sm:$0xff]
    %v51 = vld [vmem:[#allocation2 + $0xc8] sm:$0xff]
    %v52 = vld [vmem:[#allocation2 + $0xd0] sm:$0xff]
    %v53 = vld [vmem:[#allocation2 + $0xd8] sm:$0xff]
    %v54 = vld [vmem:[#allocation2 + $0xe0] sm:$0xff]
    %v55 = vld [vmem:[#allocation2 + $0xe8] sm:$0xff]
    %v56 = vld [vmem:[#allocation2 + $0xf0] sm:$0xff]
    %v57 = vld [vmem:[#allocation2 + $0xf8] sm:$0xff]
    %s58 = scalar_lea.vmem [#allocation2], 256
    %v59 = vld [vmem:[%s58] ss:$8 sm:$0xf]
    %v60 = vld [vmem:[%s0] sm:$0xff]
    %v62 = vlaneseq
    %v63 = vshrl.u32 %v62, 7
    %v64 = vsub.s32 0, %v63
    %v65 = vrot.slane %v59, %v64
    %v66 = vlaneseq
    %v67 = vshrl.u32 %v66, 7
    %v68 = vsub.s32 1, %v67
    %v69 = vrot.slane %v59, %v68
    %v70 = vlaneseq
    %v71 = vshrl.u32 %v70, 7
    %v72 = vsub.s32 2, %v71
    %v73 = vrot.slane %v59, %v72
    %v74 = vlaneseq
    %v75 = vshrl.u32 %v74, 7
    %v76 = vsub.s32 3, %v75
    %v77 = vrot.slane %v59, %v76
    %vm82 = vcmask 261120
    %v84 = vsel %vm82, %v60, 0
    %86 = vmatprep.subr.mxu0 %v27
    %87 = vmatpush1.msra.mxu0 %v26
    %88 = vmatprep.subr.mxu0 %v31
    %89 = vmatpush1.msra.mxu0 %v30
    %90 = vmatprep.subr.mxu0 %v35
    %91 = vmatpush1.msra.mxu0 %v34
    %92 = vmatprep.subr.mxu0 %v39
    %93 = vmatpush1.msra.mxu0 %v38
    %94 = vmatprep.subr.mxu0 0.0
    %95 = vmatpush1.msra.mxu0 0.0
    %96 = vmatprep.subr.mxu0 0.0
    %97 = vmatpush1.msra.mxu0 0.0
    %98 = vmatprep.subr.mxu0 0.0
    %99 = vmatpush1.msra.mxu0 0.0
    %100 = vmatprep.subr.mxu0 0.0
    %101 = vmatpush1.msra.mxu0 0.0
    %102 = vmatprep.subr.mxu0 0.0
    %103 = vmatpush1.msra.mxu0 0.0
    %104 = vmatprep.subr.mxu0 0.0
    %105 = vmatpush1.msra.mxu0 0.0
    %106 = vmatprep.subr.mxu0 0.0
    %107 = vmatpush1.msra.mxu0 0.0
    %108 = vmatprep.subr.mxu0 0.0
    %109 = vmatpush1.msra.mxu0 0.0
    %110 = vmatprep.subr.mxu0 0.0
    %111 = vmatpush1.msra.mxu0 0.0
    %112 = vmatprep.subr.mxu0 0.0
    %113 = vmatpush1.msra.mxu0 0.0
    %114 = vmatprep.subr.mxu0 0.0
    %115 = vmatpush1.msra.mxu0 0.0
    %116 = vmatprep.subr.mxu0 0.0
    %117 = vmatpush1.msra.mxu0 0.0
    %118 = vmatprep.subr.mxu0 0.0
    %119 = vmatpush1.msra.mxu0 0.0
    %120 = vmatprep.subr.mxu0 0.0
    %121 = vmatpush1.msra.mxu0 0.0
    %122 = vmatprep.subr.mxu0 0.0
    %123 = vmatpush1.msra.mxu0 0.0
    %124 = vmatprep.subr.mxu0 0.0
    %125 = vmatpush1.msra.mxu0 0.0
    %126 = vmatprep.subr.mxu0 0.0
    %127 = vmatpush1.msra.mxu0 0.0
    %128 = vmatprep.subr.mxu0 0.0
    %129 = vmatpush1.msra.mxu0 0.0
    %130 = vmatprep.subr.mxu0 0.0
    %131 = vmatpush1.msra.mxu0 0.0
    %132 = vmatprep.subr.mxu0 0.0
    %133 = vmatpush1.msra.mxu0 0.0
    %134 = vmatprep.subr.mxu0 0.0
    %135 = vmatpush1.msra.mxu0 0.0
    %136 = vmatprep.subr.mxu0 0.0
    %137 = vmatpush1.msra.mxu0 0.0
    %138 = vmatprep.subr.mxu0 0.0
    %139 = vmatpush1.msra.mxu0 0.0
    %140 = vmatprep.subr.mxu0 0.0
    %141 = vmatpush1.msra.mxu0 0.0
    %142 = vmatprep.subr.mxu0 0.0
    %143 = vmatpush1.msra.mxu0 0.0
    %144 = vmatprep.subr.mxu0 0.0
    %145 = vmatpush1.msra.mxu0 0.0
    %146 = vmatprep.subr.mxu0 0.0
    %147 = vmatpush1.msra.mxu0 0.0
    %148 = vmatprep.subr.mxu0 0.0
    %149 = vmatpush1.msra.mxu0 0.0
    %150 = vmatprep.mubr.f32.mxu0 0.0
    %151 = vmatmul.mubr.f32.gmra.mrb[0].mxu0 %v84
    %v152 = vpop.f32.mrb[0].mxu0
    %v153 = vadd.f32 %v65, %v152
    %v154 = vpop.f32.mrb[0].mxu0
    %v155 = vadd.f32 %v69, %v154
    %156 = vdwg.mxu0
    %157 = vmatprep.subr.mxu0 %v29
    %158 = vmatpush1.msra.mxu0 %v28
    %159 = vmatprep.subr.mxu0 %v33
    %160 = vmatpush1.msra.mxu0 %v32
    %161 = vmatprep.subr.mxu0 %v37
    %162 = vmatpush1.msra.mxu0 %v36
    %163 = vmatprep.subr.mxu0 %v41
    %164 = vmatpush1.msra.mxu0 %v40
    %165 = vmatprep.subr.mxu0 0.0
    %166 = vmatpush1.msra.mxu0 0.0
    %167 = vmatprep.subr.mxu0 0.0
    %168 = vmatpush1.msra.mxu0 0.0
    %169 = vmatprep.subr.mxu0 0.0
    %170 = vmatpush1.msra.mxu0 0.0
    %171 = vmatprep.subr.mxu0 0.0
    %172 = vmatpush1.msra.mxu0 0.0
    %173 = vmatprep.subr.mxu0 0.0
    %174 = vmatpush1.msra.mxu0 0.0
    %175 = vmatprep.subr.mxu0 0.0
    %176 = vmatpush1.msra.mxu0 0.0
    %177 = vmatprep.subr.mxu0 0.0
    %178 = vmatpush1.msra.mxu0 0.0
    %179 = vmatprep.subr.mxu0 0.0
    %180 = vmatpush1.msra.mxu0 0.0
    %181 = vmatprep.subr.mxu0 0.0
    %182 = vmatpush1.msra.mxu0 0.0
    %183 = vmatprep.subr.mxu0 0.0
    %184 = vmatpush1.msra.mxu0 0.0
    %185 = vmatprep.subr.mxu0 0.0
    %186 = vmatpush1.msra.mxu0 0.0
    %187 = vmatprep.subr.mxu0 0.0
    %188 = vmatpush1.msra.mxu0 0.0
    %189 = vmatprep.subr.mxu0 0.0
    %190 = vmatpush1.msra.mxu0 0.0
    %191 = vmatprep.subr.mxu0 0.0
    %192 = vmatpush1.msra.mxu0 0.0
    %193 = vmatprep.subr.mxu0 0.0
    %194 = vmatpush1.msra.mxu0 0.0
    %195 = vmatprep.subr.mxu0 0.0
    %196 = vmatpush1.msra.mxu0 0.0
    %197 = vmatprep.subr.mxu0 0.0
    %198 = vmatpush1.msra.mxu0 0.0
    %199 = vmatprep.subr.mxu0 0.0
    %200 = vmatpush1.msra.mxu0 0.0
    %201 = vmatprep.subr.mxu0 0.0
    %202 = vmatpush1.msra.mxu0 0.0
    %203 = vmatprep.subr.mxu0 0.0
    %204 = vmatpush1.msra.mxu0 0.0
    %205 = vmatprep.subr.mxu0 0.0
    %206 = vmatpush1.msra.mxu0 0.0
    %207 = vmatprep.subr.mxu0 0.0
    %208 = vmatpush1.msra.mxu0 0.0
    %209 = vmatprep.subr.mxu0 0.0
    %210 = vmatpush1.msra.mxu0 0.0
    %211 = vmatprep.subr.mxu0 0.0
    %212 = vmatpush1.msra.mxu0 0.0
    %213 = vmatprep.subr.mxu0 0.0
    %214 = vmatpush1.msra.mxu0 0.0
    %215 = vmatprep.subr.mxu0 0.0
    %216 = vmatpush1.msra.mxu0 0.0
    %217 = vmatprep.subr.mxu0 0.0
    %218 = vmatpush1.msra.mxu0 0.0
    %219 = vmatprep.subr.mxu0 0.0
    %220 = vmatpush1.msra.mxu0 0.0
    %221 = vmatprep.mubr.f32.mxu0 0.0
    %222 = vmatmul.mubr.f32.gmra.mrb[0].mxu0 %v84
    %v223 = vpop.f32.mrb[0].mxu0
    %v224 = vadd.f32 %v73, %v223
    %v225 = vpop.f32.mrb[0].mxu0
    %v226 = vadd.f32 %v77, %v225
    %227 = vdwg.mxu0
    %v229 = vsel %vm82, 0.0, 0
    %231 = vmatprep.subr.mxu0 %v43
    %232 = vmatpush1.msra.mxu0 %v42
    %233 = vmatprep.subr.mxu0 %v47
    %234 = vmatpush1.msra.mxu0 %v46
    %235 = vmatprep.subr.mxu0 %v51
    %236 = vmatpush1.msra.mxu0 %v50
    %237 = vmatprep.subr.mxu0 %v55
    %238 = vmatpush1.msra.mxu0 %v54
    %239 = vmatprep.subr.mxu0 0.0
    %240 = vmatpush1.msra.mxu0 0.0
    %241 = vmatprep.subr.mxu0 0.0
    %242 = vmatpush1.msra.mxu0 0.0
    %243 = vmatprep.subr.mxu0 0.0
    %244 = vmatpush1.msra.mxu0 0.0
    %245 = vmatprep.subr.mxu0 0.0
    %246 = vmatpush1.msra.mxu0 0.0
    %247 = vmatprep.subr.mxu0 0.0
    %248 = vmatpush1.msra.mxu0 0.0
    %249 = vmatprep.subr.mxu0 0.0
    %250 = vmatpush1.msra.mxu0 0.0
    %251 = vmatprep.subr.mxu0 0.0
    %252 = vmatpush1.msra.mxu0 0.0
    %253 = vmatprep.subr.mxu0 0.0
    %254 = vmatpush1.msra.mxu0 0.0
    %255 = vmatprep.subr.mxu0 0.0
    %256 = vmatpush1.msra.mxu0 0.0
    %257 = vmatprep.subr.mxu0 0.0
    %258 = vmatpush1.msra.mxu0 0.0
    %259 = vmatprep.subr.mxu0 0.0
    %260 = vmatpush1.msra.mxu0 0.0
    %261 = vmatprep.subr.mxu0 0.0
    %262 = vmatpush1.msra.mxu0 0.0
    %263 = vmatprep.subr.mxu0 0.0
    %264 = vmatpush1.msra.mxu0 0.0
    %265 = vmatprep.subr.mxu0 0.0
    %266 = vmatpush1.msra.mxu0 0.0
    %267 = vmatprep.subr.mxu0 0.0
    %268 = vmatpush1.msra.mxu0 0.0
    %269 = vmatprep.subr.mxu0 0.0
    %270 = vmatpush1.msra.mxu0 0.0
    %271 = vmatprep.subr.mxu0 0.0
    %272 = vmatpush1.msra.mxu0 0.0
    %273 = vmatprep.subr.mxu0 0.0
    %274 = vmatpush1.msra.mxu0 0.0
    %275 = vmatprep.subr.mxu0 0.0
    %276 = vmatpush1.msra.mxu0 0.0
    %277 = vmatprep.subr.mxu0 0.0
    %278 = vmatpush1.msra.mxu0 0.0
    %279 = vmatprep.subr.mxu0 0.0
    %280 = vmatpush1.msra.mxu0 0.0
    %281 = vmatprep.subr.mxu0 0.0
    %282 = vmatpush1.msra.mxu0 0.0
    %283 = vmatprep.subr.mxu0 0.0
    %284 = vmatpush1.msra.mxu0 0.0
    %285 = vmatprep.subr.mxu0 0.0
    %286 = vmatpush1.msra.mxu0 0.0
    %287 = vmatprep.subr.mxu0 0.0
    %288 = vmatpush1.msra.mxu0 0.0
    %289 = vmatprep.subr.mxu0 0.0
    %290 = vmatpush1.msra.mxu0 0.0
    %291 = vmatprep.subr.mxu0 0.0
    %292 = vmatpush1.msra.mxu0 0.0
    %293 = vmatprep.subr.mxu0 0.0
    %294 = vmatpush1.msra.mxu0 0.0
    %295 = vmatprep.mubr.f32.mxu0 0.0
    %296 = vmatmul.mubr.f32.gmra.mrb[0].mxu0 %v229
    %v297 = vpop.f32.mrb[0].mxu0
    %v298 = vadd.f32 0.0, %v297
    %v299 = vpop.f32.mrb[0].mxu0
    %v300 = vadd.f32 0.0, %v299
    %301 = vdwg.mxu0
    %302 = vmatprep.subr.mxu0 %v45
    %303 = vmatpush1.msra.mxu0 %v44
    %304 = vmatprep.subr.mxu0 %v49
    %305 = vmatpush1.msra.mxu0 %v48
    %306 = vmatprep.subr.mxu0 %v53
    %307 = vmatpush1.msra.mxu0 %v52
    %308 = vmatprep.subr.mxu0 %v57
    %309 = vmatpush1.msra.mxu0 %v56
    %310 = vmatprep.subr.mxu0 0.0
    %311 = vmatpush1.msra.mxu0 0.0
    %312 = vmatprep.subr.mxu0 0.0
    %313 = vmatpush1.msra.mxu0 0.0
    %314 = vmatprep.subr.mxu0 0.0
    %315 = vmatpush1.msra.mxu0 0.0
    %316 = vmatprep.subr.mxu0 0.0
    %317 = vmatpush1.msra.mxu0 0.0
    %318 = vmatprep.subr.mxu0 0.0
    %319 = vmatpush1.msra.mxu0 0.0
    %320 = vmatprep.subr.mxu0 0.0
    %321 = vmatpush1.msra.mxu0 0.0
    %322 = vmatprep.subr.mxu0 0.0
    %323 = vmatpush1.msra.mxu0 0.0
    %324 = vmatprep.subr.mxu0 0.0
    %325 = vmatpush1.msra.mxu0 0.0
    %326 = vmatprep.subr.mxu0 0.0
    %327 = vmatpush1.msra.mxu0 0.0
    %328 = vmatprep.subr.mxu0 0.0
    %329 = vmatpush1.msra.mxu0 0.0
    %330 = vmatprep.subr.mxu0 0.0
    %331 = vmatpush1.msra.mxu0 0.0
    %332 = vmatprep.subr.mxu0 0.0
    %333 = vmatpush1.msra.mxu0 0.0
    %334 = vmatprep.subr.mxu0 0.0
    %335 = vmatpush1.msra.mxu0 0.0
    %336 = vmatprep.subr.mxu0 0.0
    %337 = vmatpush1.msra.mxu0 0.0
    %338 = vmatprep.subr.mxu0 0.0
    %339 = vmatpush1.msra.mxu0 0.0
    %340 = vmatprep.subr.mxu0 0.0
    %341 = vmatpush1.msra.mxu0 0.0
    %342 = vmatprep.subr.mxu0 0.0
    %343 = vmatpush1.msra.mxu0 0.0
    %344 = vmatprep.subr.mxu0 0.0
    %345 = vmatpush1.msra.mxu0 0.0
    %346 = vmatprep.subr.mxu0 0.0
    %347 = vmatpush1.msra.mxu0 0.0
    %348 = vmatprep.subr.mxu0 0.0
    %349 = vmatpush1.msra.mxu0 0.0
    %350 = vmatprep.subr.mxu0 0.0
    %351 = vmatpush1.msra.mxu0 0.0
    %352 = vmatprep.subr.mxu0 0.0
    %353 = vmatpush1.msra.mxu0 0.0
    %354 = vmatprep.subr.mxu0 0.0
    %355 = vmatpush1.msra.mxu0 0.0
    %356 = vmatprep.subr.mxu0 0.0
    %357 = vmatpush1.msra.mxu0 0.0
    %358 = vmatprep.subr.mxu0 0.0
    %359 = vmatpush1.msra.mxu0 0.0
    %360 = vmatprep.subr.mxu0 0.0
    %361 = vmatpush1.msra.mxu0 0.0
    %362 = vmatprep.subr.mxu0 0.0
    %363 = vmatpush1.msra.mxu0 0.0
    %364 = vmatprep.subr.mxu0 0.0
    %365 = vmatpush1.msra.mxu0 0.0
    %366 = vmatprep.mubr.f32.mxu0 0.0
    %367 = vmatmul.mubr.f32.gmra.mrb[0].mxu0 %v229
    %v368 = vpop.f32.mrb[0].mxu0
    %v369 = vadd.f32 0.0, %v368
    %v370 = vpop.f32.mrb[0].mxu0
    %v371 = vadd.f32 0.0, %v370
    %372 = vdwg.mxu0
    %v373 = vadd.f32 %v153, %v298
    %v374 = vadd.f32 %v155, %v300
    %v375 = vadd.f32 %v224, %v369
    %v376 = vadd.f32 %v226, %v371
    %v377 = vxor.u32 %v373, 2147483648
    %v378 = vmul.f32 %v377, 1.442695
    %v379 = vpow.pop %v378
    %v380 = vadd.f32 %v379, 1.0
    %v381 = vrcp.pop %v380
    %v382 = vmul.f32 1.0, %v381
    %v383 = vxor.u32 %v374, 2147483648
    %v384 = vmul.f32 %v383, 1.442695
    %v385 = vpow.pop %v384
    %v386 = vadd.f32 %v385, 1.0
    %v387 = vrcp.pop %v386
    %v388 = vmul.f32 1.0, %v387
    %v389 = vtanh.pop %v375
    %v390 = vxor.u32 %v376, 2147483648
    %v391 = vmul.f32 %v390, 1.442695
    %v392 = vpow.pop %v391
    %v393 = vadd.f32 %v392, 1.0
    %v394 = vrcp.pop %v393
    %v395 = vmul.f32 1.0, %v394
    %v396 = vmul.f32 %v388, 0.0
    %v397 = vmul.f32 %v382, %v389
    %v398 = vadd.f32 %v396, %v397
    %v399 = vtanh.pop %v398
    %v400 = vmul.f32 %v395, %v399
    %v402 = vsel %vm82, %v400, 0
    %404 = vmatprep.subr.mxu0 %v43
    %405 = vmatpush1.msra.mxu0 %v42
    %406 = vmatprep.subr.mxu0 %v47
    %407 = vmatpush1.msra.mxu0 %v46
    %408 = vmatprep.subr.mxu0 %v51
    %409 = vmatpush1.msra.mxu0 %v50
    %410 = vmatprep.subr.mxu0 %v55
    %411 = vmatpush1.msra.mxu0 %v54
    %412 = vmatprep.subr.mxu0 0.0
    %413 = vmatpush1.msra.mxu0 0.0
    %414 = vmatprep.subr.mxu0 0.0
    %415 = vmatpush1.msra.mxu0 0.0
    %416 = vmatprep.subr.mxu0 0.0
    %417 = vmatpush1.msra.mxu0 0.0
    %418 = vmatprep.subr.mxu0 0.0
    %419 = vmatpush1.msra.mxu0 0.0
    %420 = vmatprep.subr.mxu0 0.0
    %421 = vmatpush1.msra.mxu0 0.0
    %422 = vmatprep.subr.mxu0 0.0
    %423 = vmatpush1.msra.mxu0 0.0
    %424 = vmatprep.subr.mxu0 0.0
    %425 = vmatpush1.msra.mxu0 0.0
    %426 = vmatprep.subr.mxu0 0.0
    %427 = vmatpush1.msra.mxu0 0.0
    %428 = vmatprep.subr.mxu0 0.0
    %429 = vmatpush1.msra.mxu0 0.0
    %430 = vmatprep.subr.mxu0 0.0
    %431 = vmatpush1.msra.mxu0 0.0
    %432 = vmatprep.subr.mxu0 0.0
    %433 = vmatpush1.msra.mxu0 0.0
    %434 = vmatprep.subr.mxu0 0.0
    %435 = vmatpush1.msra.mxu0 0.0
    %436 = vmatprep.subr.mxu0 0.0
    %437 = vmatpush1.msra.mxu0 0.0
    %438 = vmatprep.subr.mxu0 0.0
    %439 = vmatpush1.msra.mxu0 0.0
    %440 = vmatprep.subr.mxu0 0.0
    %441 = vmatpush1.msra.mxu0 0.0
    %442 = vmatprep.subr.mxu0 0.0
    %443 = vmatpush1.msra.mxu0 0.0
    %444 = vmatprep.subr.mxu0 0.0
    %445 = vmatpush1.msra.mxu0 0.0
    %446 = vmatprep.subr.mxu0 0.0
    %447 = vmatpush1.msra.mxu0 0.0
    %448 = vmatprep.subr.mxu0 0.0
    %449 = vmatpush1.msra.mxu0 0.0
    %450 = vmatprep.subr.mxu0 0.0
    %451 = vmatpush1.msra.mxu0 0.0
    %452 = vmatprep.subr.mxu0 0.0
    %453 = vmatpush1.msra.mxu0 0.0
    %454 = vmatprep.subr.mxu0 0.0
    %455 = vmatpush1.msra.mxu0 0.0
    %456 = vmatprep.subr.mxu0 0.0
    %457 = vmatpush1.msra.mxu0 0.0
    %458 = vmatprep.subr.mxu0 0.0
    %459 = vmatpush1.msra.mxu0 0.0
    %460 = vmatprep.subr.mxu0 0.0
    %461 = vmatpush1.msra.mxu0 0.0
    %462 = vmatprep.subr.mxu0 0.0
    %463 = vmatpush1.msra.mxu0 0.0
    %464 = vmatprep.subr.mxu0 0.0
    %465 = vmatpush1.msra.mxu0 0.0
    %466 = vmatprep.subr.mxu0 0.0
    %467 = vmatpush1.msra.mxu0 0.0
    %468 = vmatprep.mubr.f32.mxu0 0.0
    %469 = vmatmul.mubr.f32.gmra.mrb[0].mxu0 %v402
    %v470 = vpop.f32.mrb[0].mxu0
    %v471 = vadd.f32 0.0, %v470
    %v472 = vpop.f32.mrb[0].mxu0
    %v473 = vadd.f32 0.0, %v472
    %474 = vdwg.mxu0
    %475 = vmatprep.subr.mxu0 %v45
    %476 = vmatpush1.msra.mxu0 %v44
    %477 = vmatprep.subr.mxu0 %v49
    %478 = vmatpush1.msra.mxu0 %v48
    %479 = vmatprep.subr.mxu0 %v53
    %480 = vmatpush1.msra.mxu0 %v52
    %481 = vmatprep.subr.mxu0 %v57
    %482 = vmatpush1.msra.mxu0 %v56
    %483 = vmatprep.subr.mxu0 0.0
    %484 = vmatpush1.msra.mxu0 0.0
    %485 = vmatprep.subr.mxu0 0.0
    %486 = vmatpush1.msra.mxu0 0.0
    %487 = vmatprep.subr.mxu0 0.0
    %488 = vmatpush1.msra.mxu0 0.0
    %489 = vmatprep.subr.mxu0 0.0
    %490 = vmatpush1.msra.mxu0 0.0
    %491 = vmatprep.subr.mxu0 0.0
    %492 = vmatpush1.msra.mxu0 0.0
    %493 = vmatprep.subr.mxu0 0.0
    %494 = vmatpush1.msra.mxu0 0.0
    %495 = vmatprep.subr.mxu0 0.0
    %496 = vmatpush1.msra.mxu0 0.0
    %497 = vmatprep.subr.mxu0 0.0
    %498 = vmatpush1.msra.mxu0 0.0
    %499 = vmatprep.subr.mxu0 0.0
    %500 = vmatpush1.msra.mxu0 0.0
    %501 = vmatprep.subr.mxu0 0.0
    %502 = vmatpush1.msra.mxu0 0.0
    %503 = vmatprep.subr.mxu0 0.0
    %504 = vmatpush1.msra.mxu0 0.0
    %505 = vmatprep.subr.mxu0 0.0
    %506 = vmatpush1.msra.mxu0 0.0
    %507 = vmatprep.subr.mxu0 0.0
    %508 = vmatpush1.msra.mxu0 0.0
    %509 = vmatprep.subr.mxu0 0.0
    %510 = vmatpush1.msra.mxu0 0.0
    %511 = vmatprep.subr.mxu0 0.0
    %512 = vmatpush1.msra.mxu0 0.0
    %513 = vmatprep.subr.mxu0 0.0
    %514 = vmatpush1.msra.mxu0 0.0
    %515 = vmatprep.subr.mxu0 0.0
    %516 = vmatpush1.msra.mxu0 0.0
    %517 = vmatprep.subr.mxu0 0.0
    %518 = vmatpush1.msra.mxu0 0.0
    %519 = vmatprep.subr.mxu0 0.0
    %520 = vmatpush1.msra.mxu0 0.0
    %521 = vmatprep.subr.mxu0 0.0
    %522 = vmatpush1.msra.mxu0 0.0
    %523 = vmatprep.subr.mxu0 0.0
    %524 = vmatpush1.msra.mxu0 0.0
    %525 = vmatprep.subr.mxu0 0.0
    %526 = vmatpush1.msra.mxu0 0.0
    %527 = vmatprep.subr.mxu0 0.0
    %528 = vmatpush1.msra.mxu0 0.0
    %529 = vmatprep.subr.mxu0 0.0
    %530 = vmatpush1.msra.mxu0 0.0
    %531 = vmatprep.subr.mxu0 0.0
    %532 = vmatpush1.msra.mxu0 0.0
    %533 = vmatprep.subr.mxu0 0.0
    %534 = vmatpush1.msra.mxu0 0.0
    %535 = vmatprep.subr.mxu0 0.0
    %536 = vmatpush1.msra.mxu0 0.0
    %537 = vmatprep.subr.mxu0 0.0
    %538 = vmatpush1.msra.mxu0 0.0
    %539 = vmatprep.mubr.f32.mxu0 0.0
    %540 = vmatmul.mubr.f32.gmra.mrb[0].mxu0 %v402
    %v541 = vpop.f32.mrb[0].mxu0
    %v542 = vadd.f32 0.0, %v541
    %v543 = vpop.f32.mrb[0].mxu0
    %v544 = vadd.f32 0.0, %v543
    %545 = vdwg.mxu0
    %v550 = vrot.slane %v471, 7
    %v551 = vrot.slane %v473, 7
    %v552 = vrot.slane %v542, 7
    %v553 = vrot.slane %v544, 7
    %v558 = vadd.f32 %v153, %v550
    %v559 = vadd.f32 %v155, %v551
    %v560 = vadd.f32 %v224, %v552
    %v561 = vadd.f32 %v226, %v553
    %v562 = vxor.u32 %v558, 2147483648
    %v563 = vmul.f32 %v562, 1.442695
    %v564 = vpow.pop %v563
    %v565 = vadd.f32 %v564, 1.0
    %v566 = vrcp.pop %v565
    %v567 = vmul.f32 1.0, %v566
    %v568 = vxor.u32 %v559, 2147483648
    %v569 = vmul.f32 %v568, 1.442695
    %v570 = vpow.pop %v569
    %v571 = vadd.f32 %v570, 1.0
    %v572 = vrcp.pop %v571
    %v573 = vmul.f32 1.0, %v572
    %v574 = vtanh.pop %v560
    %v575 = vxor.u32 %v561, 2147483648
    %v576 = vmul.f32 %v575, 1.442695
    %v577 = vpow.pop %v576
    %v578 = vadd.f32 %v577, 1.0
    %v579 = vrcp.pop %v578
    %v580 = vmul.f32 1.0, %v579
    %v582 = vrot.slane %v398, 7
    %v584 = vmul.f32 %v573, %v582
    %v585 = vmul.f32 %v567, %v574
    %v586 = vadd.f32 %v584, %v585
    %v587 = vtanh.pop %v586
    %v588 = vmul.f32 %v580, %v587
    %v590 = vrot.slane %v588, 1
    %v591 = vsel %vm82, %v590, 0
    %593 = vmatprep.subr.mxu0 %v43
    %594 = vmatpush1.msra.mxu0 %v42
    %595 = vmatprep.subr.mxu0 %v47
    %596 = vmatpush1.msra.mxu0 %v46
    %597 = vmatprep.subr.mxu0 %v51
    %598 = vmatpush1.msra.mxu0 %v50
    %599 = vmatprep.subr.mxu0 %v55
    %600 = vmatpush1.msra.mxu0 %v54
    %601 = vmatprep.subr.mxu0 0.0
    %602 = vmatpush1.msra.mxu0 0.0
    %603 = vmatprep.subr.mxu0 0.0
    %604 = vmatpush1.msra.mxu0 0.0
    %605 = vmatprep.subr.mxu0 0.0
    %606 = vmatpush1.msra.mxu0 0.0
    %607 = vmatprep.subr.mxu0 0.0
    %608 = vmatpush1.msra.mxu0 0.0
    %609 = vmatprep.subr.mxu0 0.0
    %610 = vmatpush1.msra.mxu0 0.0
    %611 = vmatprep.subr.mxu0 0.0
    %612 = vmatpush1.msra.mxu0 0.0
    %613 = vmatprep.subr.mxu0 0.0
    %614 = vmatpush1.msra.mxu0 0.0
    %615 = vmatprep.subr.mxu0 0.0
    %616 = vmatpush1.msra.mxu0 0.0
    %617 = vmatprep.subr.mxu0 0.0
    %618 = vmatpush1.msra.mxu0 0.0
    %619 = vmatprep.subr.mxu0 0.0
    %620 = vmatpush1.msra.mxu0 0.0
    %621 = vmatprep.subr.mxu0 0.0
    %622 = vmatpush1.msra.mxu0 0.0
    %623 = vmatprep.subr.mxu0 0.0
    %624 = vmatpush1.msra.mxu0 0.0
    %625 = vmatprep.subr.mxu0 0.0
    %626 = vmatpush1.msra.mxu0 0.0
    %627 = vmatprep.subr.mxu0 0.0
    %628 = vmatpush1.msra.mxu0 0.0
    %629 = vmatprep.subr.mxu0 0.0
    %630 = vmatpush1.msra.mxu0 0.0
    %631 = vmatprep.subr.mxu0 0.0
    %632 = vmatpush1.msra.mxu0 0.0
    %633 = vmatprep.subr.mxu0 0.0
    %634 = vmatpush1.msra.mxu0 0.0
    %635 = vmatprep.subr.mxu0 0.0
    %636 = vmatpush1.msra.mxu0 0.0
    %637 = vmatprep.subr.mxu0 0.0
    %638 = vmatpush1.msra.mxu0 0.0
    %639 = vmatprep.subr.mxu0 0.0
    %640 = vmatpush1.msra.mxu0 0.0
    %641 = vmatprep.subr.mxu0 0.0
    %642 = vmatpush1.msra.mxu0 0.0
    %643 = vmatprep.subr.mxu0 0.0
    %644 = vmatpush1.msra.mxu0 0.0
    %645 = vmatprep.subr.mxu0 0.0
    %646 = vmatpush1.msra.mxu0 0.0
    %647 = vmatprep.subr.mxu0 0.0
    %648 = vmatpush1.msra.mxu0 0.0
    %649 = vmatprep.subr.mxu0 0.0
    %650 = vmatpush1.msra.mxu0 0.0
    %651 = vmatprep.subr.mxu0 0.0
    %652 = vmatpush1.msra.mxu0 0.0
    %653 = vmatprep.subr.mxu0 0.0
    %654 = vmatpush1.msra.mxu0 0.0
    %655 = vmatprep.subr.mxu0 0.0
    %656 = vmatpush1.msra.mxu0 0.0
    %657 = vmatprep.mubr.f32.mxu0 0.0
    %658 = vmatmul.mubr.f32.gmra.mrb[0].mxu0 %v591
    %v659 = vpop.f32.mrb[0].mxu0
    %v660 = vadd.f32 0.0, %v659
    %v661 = vpop.f32.mrb[0].mxu0
    %v662 = vadd.f32 0.0, %v661
    %663 = vdwg.mxu0
    %664 = vmatprep.subr.mxu0 %v45
    %665 = vmatpush1.msra.mxu0 %v44
    %666 = vmatprep.subr.mxu0 %v49
    %667 = vmatpush1.msra.mxu0 %v48
    %668 = vmatprep.subr.mxu0 %v53
    %669 = vmatpush1.msra.mxu0 %v52
    %670 = vmatprep.subr.mxu0 %v57
    %671 = vmatpush1.msra.mxu0 %v56
    %672 = vmatprep.subr.mxu0 0.0
    %673 = vmatpush1.msra.mxu0 0.0
    %674 = vmatprep.subr.mxu0 0.0
    %675 = vmatpush1.msra.mxu0 0.0
    %676 = vmatprep.subr.mxu0 0.0
    %677 = vmatpush1.msra.mxu0 0.0
    %678 = vmatprep.subr.mxu0 0.0
    %679 = vmatpush1.msra.mxu0 0.0
    %680 = vmatprep.subr.mxu0 0.0
    %681 = vmatpush1.msra.mxu0 0.0
    %682 = vmatprep.subr.mxu0 0.0
    %683 = vmatpush1.msra.mxu0 0.0
    %684 = vmatprep.subr.mxu0 0.0
    %685 = vmatpush1.msra.mxu0 0.0
    %686 = vmatprep.subr.mxu0 0.0
    %687 = vmatpush1.msra.mxu0 0.0
    %688 = vmatprep.subr.mxu0 0.0
    %689 = vmatpush1.msra.mxu0 0.0
    %690 = vmatprep.subr.mxu0 0.0
    %691 = vmatpush1.msra.mxu0 0.0
    %692 = vmatprep.subr.mxu0 0.0
    %693 = vmatpush1.msra.mxu0 0.0
    %694 = vmatprep.subr.mxu0 0.0
    %695 = vmatpush1.msra.mxu0 0.0
    %696 = vmatprep.subr.mxu0 0.0
    %697 = vmatpush1.msra.mxu0 0.0
    %698 = vmatprep.subr.mxu0 0.0
    %699 = vmatpush1.msra.mxu0 0.0
    %700 = vmatprep.subr.mxu0 0.0
    %701 = vmatpush1.msra.mxu0 0.0
    %702 = vmatprep.subr.mxu0 0.0
    %703 = vmatpush1.msra.mxu0 0.0
    %704 = vmatprep.subr.mxu0 0.0
    %705 = vmatpush1.msra.mxu0 0.0
    %706 = vmatprep.subr.mxu0 0.0
    %707 = vmatpush1.msra.mxu0 0.0
    %708 = vmatprep.subr.mxu0 0.0
    %709 = vmatpush1.msra.mxu0 0.0
    %710 = vmatprep.subr.mxu0 0.0
    %711 = vmatpush1.msra.mxu0 0.0
    %712 = vmatprep.subr.mxu0 0.0
    %713 = vmatpush1.msra.mxu0 0.0
    %714 = vmatprep.subr.mxu0 0.0
    %715 = vmatpush1.msra.mxu0 0.0
    %716 = vmatprep.subr.mxu0 0.0
    %717 = vmatpush1.msra.mxu0 0.0
    %718 = vmatprep.subr.mxu0 0.0
    %719 = vmatpush1.msra.mxu0 0.0
    %720 = vmatprep.subr.mxu0 0.0
    %721 = vmatpush1.msra.mxu0 0.0
    %722 = vmatprep.subr.mxu0 0.0
    %723 = vmatpush1.msra.mxu0 0.0
    %724 = vmatprep.subr.mxu0 0.0
    %725 = vmatpush1.msra.mxu0 0.0
    %726 = vmatprep.subr.mxu0 0.0
    %727 = vmatpush1.msra.mxu0 0.0
    %728 = vmatprep.mubr.f32.mxu0 0.0
    %729 = vmatmul.mubr.f32.gmra.mrb[0].mxu0 %v591
    %v730 = vpop.f32.mrb[0].mxu0
    %v731 = vadd.f32 0.0, %v730
    %v732 = vpop.f32.mrb[0].mxu0
    %v733 = vadd.f32 0.0, %v732
    %734 = vdwg.mxu0
    %v739 = vrot.slane %v660, 6
    %v740 = vrot.slane %v662, 6
    %v741 = vrot.slane %v731, 6
    %v742 = vrot.slane %v733, 6
    %v747 = vadd.f32 %v153, %v739
    %v748 = vadd.f32 %v155, %v740
    %v749 = vadd.f32 %v224, %v741
    %v750 = vadd.f32 %v226, %v742
    %v751 = vxor.u32 %v747, 2147483648
    %v752 = vmul.f32 %v751, 1.442695
    %v753 = vpow.pop %v752
    %v754 = vadd.f32 %v753, 1.0
    %v755 = vrcp.pop %v754
    %v756 = vmul.f32 1.0, %v755
    %v757 = vxor.u32 %v748, 2147483648
    %v758 = vmul.f32 %v757, 1.442695
    %v759 = vpow.pop %v758
    %v760 = vadd.f32 %v759, 1.0
    %v761 = vrcp.pop %v760
    %v762 = vmul.f32 1.0, %v761
    %v763 = vtanh.pop %v749
    %v764 = vxor.u32 %v750, 2147483648
    %v765 = vmul.f32 %v764, 1.442695
    %v766 = vpow.pop %v765
    %v767 = vadd.f32 %v766, 1.0
    %v768 = vrcp.pop %v767
    %v769 = vmul.f32 1.0, %v768
    %v771 = vrot.slane %v586, 7
    %v773 = vmul.f32 %v762, %v771
    %v774 = vmul.f32 %v756, %v763
    %v775 = vadd.f32 %v773, %v774
    %v776 = vtanh.pop %v775
    %v777 = vmul.f32 %v769, %v776
    %v779 = vrot.slane %v777, 2
    %v780 = vsel %vm82, %v779, 0
    %782 = vmatprep.subr.mxu0 %v43
    %783 = vmatpush1.msra.mxu0 %v42
    %784 = vmatprep.subr.mxu0 %v47
    %785 = vmatpush1.msra.mxu0 %v46
    %786 = vmatprep.subr.mxu0 %v51
    %787 = vmatpush1.msra.mxu0 %v50
    %788 = vmatprep.subr.mxu0 %v55
    %789 = vmatpush1.msra.mxu0 %v54
    %790 = vmatprep.subr.mxu0 0.0
    %791 = vmatpush1.msra.mxu0 0.0
    %792 = vmatprep.subr.mxu0 0.0
    %793 = vmatpush1.msra.mxu0 0.0
    %794 = vmatprep.subr.mxu0 0.0
    %795 = vmatpush1.msra.mxu0 0.0
    %796 = vmatprep.subr.mxu0 0.0
    %797 = vmatpush1.msra.mxu0 0.0
    %798 = vmatprep.subr.mxu0 0.0
    %799 = vmatpush1.msra.mxu0 0.0
    %800 = vmatprep.subr.mxu0 0.0
    %801 = vmatpush1.msra.mxu0 0.0
    %802 = vmatprep.subr.mxu0 0.0
    %803 = vmatpush1.msra.mxu0 0.0
    %804 = vmatprep.subr.mxu0 0.0
    %805 = vmatpush1.msra.mxu0 0.0
    %806 = vmatprep.subr.mxu0 0.0
    %807 = vmatpush1.msra.mxu0 0.0
    %808 = vmatprep.subr.mxu0 0.0
    %809 = vmatpush1.msra.mxu0 0.0
    %810 = vmatprep.subr.mxu0 0.0
    %811 = vmatpush1.msra.mxu0 0.0
    %812 = vmatprep.subr.mxu0 0.0
    %813 = vmatpush1.msra.mxu0 0.0
    %814 = vmatprep.subr.mxu0 0.0
    %815 = vmatpush1.msra.mxu0 0.0
    %816 = vmatprep.subr.mxu0 0.0
    %817 = vmatpush1.msra.mxu0 0.0
    %818 = vmatprep.subr.mxu0 0.0
    %819 = vmatpush1.msra.mxu0 0.0
    %820 = vmatprep.subr.mxu0 0.0
    %821 = vmatpush1.msra.mxu0 0.0
    %822 = vmatprep.subr.mxu0 0.0
    %823 = vmatpush1.msra.mxu0 0.0
    %824 = vmatprep.subr.mxu0 0.0
    %825 = vmatpush1.msra.mxu0 0.0
    %826 = vmatprep.subr.mxu0 0.0
    %827 = vmatpush1.msra.mxu0 0.0
    %828 = vmatprep.subr.mxu0 0.0
    %829 = vmatpush1.msra.mxu0 0.0
    %830 = vmatprep.subr.mxu0 0.0
    %831 = vmatpush1.msra.mxu0 0.0
    %832 = vmatprep.subr.mxu0 0.0
    %833 = vmatpush1.msra.mxu0 0.0
    %834 = vmatprep.subr.mxu0 0.0
    %835 = vmatpush1.msra.mxu0 0.0
    %836 = vmatprep.subr.mxu0 0.0
    %837 = vmatpush1.msra.mxu0 0.0
    %838 = vmatprep.subr.mxu0 0.0
    %839 = vmatpush1.msra.mxu0 0.0
    %840 = vmatprep.subr.mxu0 0.0
    %841 = vmatpush1.msra.mxu0 0.0
    %842 = vmatprep.subr.mxu0 0.0
    %843 = vmatpush1.msra.mxu0 0.0
    %844 = vmatprep.subr.mxu0 0.0
    %845 = vmatpush1.msra.mxu0 0.0
    %846 = vmatprep.mubr.f32.mxu0 0.0
    %847 = vmatmul.mubr.f32.gmra.mrb[0].mxu0 %v780
    %v848 = vpop.f32.mrb[0].mxu0
    %v849 = vadd.f32 0.0, %v848
    %v850 = vpop.f32.mrb[0].mxu0
    %v851 = vadd.f32 0.0, %v850
    %852 = vdwg.mxu0
    %853 = vmatprep.subr.mxu0 %v45
    %854 = vmatpush1.msra.mxu0 %v44
    %855 = vmatprep.subr.mxu0 %v49
    %856 = vmatpush1.msra.mxu0 %v48
    %857 = vmatprep.subr.mxu0 %v53
    %858 = vmatpush1.msra.mxu0 %v52
    %859 = vmatprep.subr.mxu0 %v57
    %860 = vmatpush1.msra.mxu0 %v56
    %861 = vmatprep.subr.mxu0 0.0
    %862 = vmatpush1.msra.mxu0 0.0
    %863 = vmatprep.subr.mxu0 0.0
    %864 = vmatpush1.msra.mxu0 0.0
    %865 = vmatprep.subr.mxu0 0.0
    %866 = vmatpush1.msra.mxu0 0.0
    %867 = vmatprep.subr.mxu0 0.0
    %868 = vmatpush1.msra.mxu0 0.0
    %869 = vmatprep.subr.mxu0 0.0
    %870 = vmatpush1.msra.mxu0 0.0
    %871 = vmatprep.subr.mxu0 0.0
    %872 = vmatpush1.msra.mxu0 0.0
    %873 = vmatprep.subr.mxu0 0.0
    %874 = vmatpush1.msra.mxu0 0.0
    %875 = vmatprep.subr.mxu0 0.0
    %876 = vmatpush1.msra.mxu0 0.0
    %877 = vmatprep.subr.mxu0 0.0
    %878 = vmatpush1.msra.mxu0 0.0
    %879 = vmatprep.subr.mxu0 0.0
    %880 = vmatpush1.msra.mxu0 0.0
    %881 = vmatprep.subr.mxu0 0.0
    %882 = vmatpush1.msra.mxu0 0.0
    %883 = vmatprep.subr.mxu0 0.0
    %884 = vmatpush1.msra.mxu0 0.0
    %885 = vmatprep.subr.mxu0 0.0
    %886 = vmatpush1.msra.mxu0 0.0
    %887 = vmatprep.subr.mxu0 0.0
    %888 = vmatpush1.msra.mxu0 0.0
    %889 = vmatprep.subr.mxu0 0.0
    %890 = vmatpush1.msra.mxu0 0.0
    %891 = vmatprep.subr.mxu0 0.0
    %892 = vmatpush1.msra.mxu0 0.0
    %893 = vmatprep.subr.mxu0 0.0
    %894 = vmatpush1.msra.mxu0 0.0
    %895 = vmatprep.subr.mxu0 0.0
    %896 = vmatpush1.msra.mxu0 0.0
    %897 = vmatprep.subr.mxu0 0.0
    %898 = vmatpush1.msra.mxu0 0.0
    %899 = vmatprep.subr.mxu0 0.0
    %900 = vmatpush1.msra.mxu0 0.0
    %901 = vmatprep.subr.mxu0 0.0
    %902 = vmatpush1.msra.mxu0 0.0
    %903 = vmatprep.subr.mxu0 0.0
    %904 = vmatpush1.msra.mxu0 0.0
    %905 = vmatprep.subr.mxu0 0.0
    %906 = vmatpush1.msra.mxu0 0.0
    %907 = vmatprep.subr.mxu0 0.0
    %908 = vmatpush1.msra.mxu0 0.0
    %909 = vmatprep.subr.mxu0 0.0
    %910 = vmatpush1.msra.mxu0 0.0
    %911 = vmatprep.subr.mxu0 0.0
    %912 = vmatpush1.msra.mxu0 0.0
    %913 = vmatprep.subr.mxu0 0.0
    %914 = vmatpush1.msra.mxu0 0.0
    %915 = vmatprep.subr.mxu0 0.0
    %916 = vmatpush1.msra.mxu0 0.0
    %917 = vmatprep.mubr.f32.mxu0 0.0
    %918 = vmatmul.mubr.f32.gmra.mrb[0].mxu0 %v780
    %v919 = vpop.f32.mrb[0].mxu0
    %v920 = vadd.f32 0.0, %v919
    %v921 = vpop.f32.mrb[0].mxu0
    %v922 = vadd.f32 0.0, %v921
    %923 = vdwg.mxu0
    %v928 = vrot.slane %v849, 5
    %v929 = vrot.slane %v851, 5
    %v930 = vrot.slane %v920, 5
    %v931 = vrot.slane %v922, 5
    %v936 = vadd.f32 %v153, %v928
    %v937 = vadd.f32 %v155, %v929
    %v938 = vadd.f32 %v224, %v930
    %v939 = vadd.f32 %v226, %v931
    %v940 = vxor.u32 %v936, 2147483648
    %v941 = vmul.f32 %v940, 1.442695
    %v942 = vpow.pop %v941
    %v943 = vadd.f32 %v942, 1.0
    %v944 = vrcp.pop %v943
    %v945 = vmul.f32 1.0, %v944
    %v946 = vxor.u32 %v937, 2147483648
    %v947 = vmul.f32 %v946, 1.442695
    %v948 = vpow.pop %v947
    %v949 = vadd.f32 %v948, 1.0
    %v950 = vrcp.pop %v949
    %v951 = vmul.f32 1.0, %v950
    %v952 = vtanh.pop %v938
    %v953 = vxor.u32 %v939, 2147483648
    %v954 = vmul.f32 %v953, 1.442695
    %v955 = vpow.pop %v954
    %v956 = vadd.f32 %v955, 1.0
    %v957 = vrcp.pop %v956
    %v958 = vmul.f32 1.0, %v957
    %v960 = vrot.slane %v775, 7
    %v962 = vmul.f32 %v951, %v960
    %v963 = vmul.f32 %v945, %v952
    %v964 = vadd.f32 %v962, %v963
    %v965 = vtanh.pop %v964
    %v966 = vmul.f32 %v958, %v965
    %v968 = vrot.slane %v966, 3
    %v969 = vsel %vm82, %v968, 0
    %971 = vmatprep.subr.mxu0 %v43
    %972 = vmatpush1.msra.mxu0 %v42
    %973 = vmatprep.subr.mxu0 %v47
    %974 = vmatpush1.msra.mxu0 %v46
    %975 = vmatprep.subr.mxu0 %v51
    %976 = vmatpush1.msra.mxu0 %v50
    %977 = vmatprep.subr.mxu0 %v55
    %978 = vmatpush1.msra.mxu0 %v54
    %979 = vmatprep.subr.mxu0 0.0
    %980 = vmatpush1.msra.mxu0 0.0
    %981 = vmatprep.subr.mxu0 0.0
    %982 = vmatpush1.msra.mxu0 0.0
    %983 = vmatprep.subr.mxu0 0.0
    %984 = vmatpush1.msra.mxu0 0.0
    %985 = vmatprep.subr.mxu0 0.0
    %986 = vmatpush1.msra.mxu0 0.0
    %987 = vmatprep.subr.mxu0 0.0
    %988 = vmatpush1.msra.mxu0 0.0
    %989 = vmatprep.subr.mxu0 0.0
    %990 = vmatpush1.msra.mxu0 0.0
    %991 = vmatprep.subr.mxu0 0.0
    %992 = vmatpush1.msra.mxu0 0.0
    %993 = vmatprep.subr.mxu0 0.0
    %994 = vmatpush1.msra.mxu0 0.0
    %995 = vmatprep.subr.mxu0 0.0
    %996 = vmatpush1.msra.mxu0 0.0
    %997 = vmatprep.subr.mxu0 0.0
    %998 = vmatpush1.msra.mxu0 0.0
    %999 = vmatprep.subr.mxu0 0.0
    %1000 = vmatpush1.msra.mxu0 0.0
    %1001 = vmatprep.subr.mxu0 0.0
    %1002 = vmatpush1.msra.mxu0 0.0
    %1003 = vmatprep.subr.mxu0 0.0
    %1004 = vmatpush1.msra.mxu0 0.0
    %1005 = vmatprep.subr.mxu0 0.0
    %1006 = vmatpush1.msra.mxu0 0.0
    %1007 = vmatprep.subr.mxu0 0.0
    %1008 = vmatpush1.msra.mxu0 0.0
    %1009 = vmatprep.subr.mxu0 0.0
    %1010 = vmatpush1.msra.mxu0 0.0
    %1011 = vmatprep.subr.mxu0 0.0
    %1012 = vmatpush1.msra.mxu0 0.0
    %1013 = vmatprep.subr.mxu0 0.0
    %1014 = vmatpush1.msra.mxu0 0.0
    %1015 = vmatprep.subr.mxu0 0.0
    %1016 = vmatpush1.msra.mxu0 0.0
    %1017 = vmatprep.subr.mxu0 0.0
    %1018 = vmatpush1.msra.mxu0 0.0
    %1019 = vmatprep.subr.mxu0 0.0
    %1020 = vmatpush1.msra.mxu0 0.0
    %1021 = vmatprep.subr.mxu0 0.0
    %1022 = vmatpush1.msra.mxu0 0.0
    %1023 = vmatprep.subr.mxu0 0.0
    %1024 = vmatpush1.msra.mxu0 0.0
    %1025 = vmatprep.subr.mxu0 0.0
    %1026 = vmatpush1.msra.mxu0 0.0
    %1027 = vmatprep.subr.mxu0 0.0
    %1028 = vmatpush1.msra.mxu0 0.0
    %1029 = vmatprep.subr.mxu0 0.0
    %1030 = vmatpush1.msra.mxu0 0.0
    %1031 = vmatprep.subr.mxu0 0.0
    %1032 = vmatpush1.msra.mxu0 0.0
    %1033 = vmatprep.subr.mxu0 0.0
    %1034 = vmatpush1.msra.mxu0 0.0
    %1035 = vmatprep.mubr.f32.mxu0 0.0
    %1036 = vmatmul.mubr.f32.gmra.mrb[0].mxu0 %v969
    %v1037 = vpop.f32.mrb[0].mxu0
    %v1038 = vadd.f32 0.0, %v1037
    %v1039 = vpop.f32.mrb[0].mxu0
    %v1040 = vadd.f32 0.0, %v1039
    %1041 = vdwg.mxu0
    %1042 = vmatprep.subr.mxu0 %v45
    %1043 = vmatpush1.msra.mxu0 %v44
    %1044 = vmatprep.subr.mxu0 %v49
    %1045 = vmatpush1.msra.mxu0 %v48
    %1046 = vmatprep.subr.mxu0 %v53
    %1047 = vmatpush1.msra.mxu0 %v52
    %1048 = vmatprep.subr.mxu0 %v57
    %1049 = vmatpush1.msra.mxu0 %v56
    %1050 = vmatprep.subr.mxu0 0.0
    %1051 = vmatpush1.msra.mxu0 0.0
    %1052 = vmatprep.subr.mxu0 0.0
    %1053 = vmatpush1.msra.mxu0 0.0
    %1054 = vmatprep.subr.mxu0 0.0
    %1055 = vmatpush1.msra.mxu0 0.0
    %1056 = vmatprep.subr.mxu0 0.0
    %1057 = vmatpush1.msra.mxu0 0.0
    %1058 = vmatprep.subr.mxu0 0.0
    %1059 = vmatpush1.msra.mxu0 0.0
    %1060 = vmatprep.subr.mxu0 0.0
    %1061 = vmatpush1.msra.mxu0 0.0
    %1062 = vmatprep.subr.mxu0 0.0
    %1063 = vmatpush1.msra.mxu0 0.0
    %1064 = vmatprep.subr.mxu0 0.0
    %1065 = vmatpush1.msra.mxu0 0.0
    %1066 = vmatprep.subr.mxu0 0.0
    %1067 = vmatpush1.msra.mxu0 0.0
    %1068 = vmatprep.subr.mxu0 0.0
    %1069 = vmatpush1.msra.mxu0 0.0
    %1070 = vmatprep.subr.mxu0 0.0
    %1071 = vmatpush1.msra.mxu0 0.0
    %1072 = vmatprep.subr.mxu0 0.0
    %1073 = vmatpush1.msra.mxu0 0.0
    %1074 = vmatprep.subr.mxu0 0.0
    %1075 = vmatpush1.msra.mxu0 0.0
    %1076 = vmatprep.subr.mxu0 0.0
    %1077 = vmatpush1.msra.mxu0 0.0
    %1078 = vmatprep.subr.mxu0 0.0
    %1079 = vmatpush1.msra.mxu0 0.0
    %1080 = vmatprep.subr.mxu0 0.0
    %1081 = vmatpush1.msra.mxu0 0.0
    %1082 = vmatprep.subr.mxu0 0.0
    %1083 = vmatpush1.msra.mxu0 0.0
    %1084 = vmatprep.subr.mxu0 0.0
    %1085 = vmatpush1.msra.mxu0 0.0
    %1086 = vmatprep.subr.mxu0 0.0
    %1087 = vmatpush1.msra.mxu0 0.0
    %1088 = vmatprep.subr.mxu0 0.0
    %1089 = vmatpush1.msra.mxu0 0.0
    %1090 = vmatprep.subr.mxu0 0.0
    %1091 = vmatpush1.msra.mxu0 0.0
    %1092 = vmatprep.subr.mxu0 0.0
    %1093 = vmatpush1.msra.mxu0 0.0
    %1094 = vmatprep.subr.mxu0 0.0
    %1095 = vmatpush1.msra.mxu0 0.0
    %1096 = vmatprep.subr.mxu0 0.0
    %1097 = vmatpush1.msra.mxu0 0.0
    %1098 = vmatprep.subr.mxu0 0.0
    %1099 = vmatpush1.msra.mxu0 0.0
    %1100 = vmatprep.subr.mxu0 0.0
    %1101 = vmatpush1.msra.mxu0 0.0
    %1102 = vmatprep.subr.mxu0 0.0
    %1103 = vmatpush1.msra.mxu0 0.0
    %1104 = vmatprep.subr.mxu0 0.0
    %1105 = vmatpush1.msra.mxu0 0.0
    %1106 = vmatprep.mubr.f32.mxu0 0.0
    %1107 = vmatmul.mubr.f32.gmra.mrb[0].mxu0 %v969
    %v1108 = vpop.f32.mrb[0].mxu0
    %v1109 = vadd.f32 0.0, %v1108
    %v1110 = vpop.f32.mrb[0].mxu0
    %v1111 = vadd.f32 0.0, %v1110
    %1112 = vdwg.mxu0
    %v1117 = vrot.slane %v1038, 4
    %v1118 = vrot.slane %v1040, 4
    %v1119 = vrot.slane %v1109, 4
    %v1120 = vrot.slane %v1111, 4
    %v1125 = vadd.f32 %v153, %v1117
    %v1126 = vadd.f32 %v155, %v1118
    %v1127 = vadd.f32 %v224, %v1119
    %v1128 = vadd.f32 %v226, %v1120
    %v1129 = vxor.u32 %v1125, 2147483648
    %v1130 = vmul.f32 %v1129, 1.442695
    %v1131 = vpow.pop %v1130
    %v1132 = vadd.f32 %v1131, 1.0
    %v1133 = vrcp.pop %v1132
    %v1134 = vmul.f32 1.0, %v1133
    %v1135 = vxor.u32 %v1126, 2147483648
    %v1136 = vmul.f32 %v1135, 1.442695
    %v1137 = vpow.pop %v1136
    %v1138 = vadd.f32 %v1137, 1.0
    %v1139 = vrcp.pop %v1138
    %v1140 = vmul.f32 1.0, %v1139
    %v1141 = vtanh.pop %v1127
    %v1142 = vxor.u32 %v1128, 2147483648
    %v1143 = vmul.f32 %v1142, 1.442695
    %v1144 = vpow.pop %v1143
    %v1145 = vadd.f32 %v1144, 1.0
    %v1146 = vrcp.pop %v1145
    %v1147 = vmul.f32 1.0, %v1146
    %v1149 = vrot.slane %v964, 7
    %v1151 = vmul.f32 %v1140, %v1149
    %v1152 = vmul.f32 %v1134, %v1141
    %v1153 = vadd.f32 %v1151, %v1152
    %v1154 = vtanh.pop %v1153
    %v1155 = vmul.f32 %v1147, %v1154
    %v1157 = vrot.slane %v1155, 4
    %v1158 = vsel %vm82, %v1157, 0
    %1160 = vmatprep.subr.mxu0 %v43
    %1161 = vmatpush1.msra.mxu0 %v42
    %1162 = vmatprep.subr.mxu0 %v47
    %1163 = vmatpush1.msra.mxu0 %v46
    %1164 = vmatprep.subr.mxu0 %v51
    %1165 = vmatpush1.msra.mxu0 %v50
    %1166 = vmatprep.subr.mxu0 %v55
    %1167 = vmatpush1.msra.mxu0 %v54
    %1168 = vmatprep.subr.mxu0 0.0
    %1169 = vmatpush1.msra.mxu0 0.0
    %1170 = vmatprep.subr.mxu0 0.0
    %1171 = vmatpush1.msra.mxu0 0.0
    %1172 = vmatprep.subr.mxu0 0.0
    %1173 = vmatpush1.msra.mxu0 0.0
    %1174 = vmatprep.subr.mxu0 0.0
    %1175 = vmatpush1.msra.mxu0 0.0
    %1176 = vmatprep.subr.mxu0 0.0
    %1177 = vmatpush1.msra.mxu0 0.0
    %1178 = vmatprep.subr.mxu0 0.0
    %1179 = vmatpush1.msra.mxu0 0.0
    %1180 = vmatprep.subr.mxu0 0.0
    %1181 = vmatpush1.msra.mxu0 0.0
    %1182 = vmatprep.subr.mxu0 0.0
    %1183 = vmatpush1.msra.mxu0 0.0
    %1184 = vmatprep.subr.mxu0 0.0
    %1185 = vmatpush1.msra.mxu0 0.0
    %1186 = vmatprep.subr.mxu0 0.0
    %1187 = vmatpush1.msra.mxu0 0.0
    %1188 = vmatprep.subr.mxu0 0.0
    %1189 = vmatpush1.msra.mxu0 0.0
    %1190 = vmatprep.subr.mxu0 0.0
    %1191 = vmatpush1.msra.mxu0 0.0
    %1192 = vmatprep.subr.mxu0 0.0
    %1193 = vmatpush1.msra.mxu0 0.0
    %1194 = vmatprep.subr.mxu0 0.0
    %1195 = vmatpush1.msra.mxu0 0.0
    %1196 = vmatprep.subr.mxu0 0.0
    %1197 = vmatpush1.msra.mxu0 0.0
    %1198 = vmatprep.subr.mxu0 0.0
    %1199 = vmatpush1.msra.mxu0 0.0
    %1200 = vmatprep.subr.mxu0 0.0
    %1201 = vmatpush1.msra.mxu0 0.0
    %1202 = vmatprep.subr.mxu0 0.0
    %1203 = vmatpush1.msra.mxu0 0.0
    %1204 = vmatprep.subr.mxu0 0.0
    %1205 = vmatpush1.msra.mxu0 0.0
    %1206 = vmatprep.subr.mxu0 0.0
    %1207 = vmatpush1.msra.mxu0 0.0
    %1208 = vmatprep.subr.mxu0 0.0
    %1209 = vmatpush1.msra.mxu0 0.0
    %1210 = vmatprep.subr.mxu0 0.0
    %1211 = vmatpush1.msra.mxu0 0.0
    %1212 = vmatprep.subr.mxu0 0.0
    %1213 = vmatpush1.msra.mxu0 0.0
    %1214 = vmatprep.subr.mxu0 0.0
    %1215 = vmatpush1.msra.mxu0 0.0
    %1216 = vmatprep.subr.mxu0 0.0
    %1217 = vmatpush1.msra.mxu0 0.0
    %1218 = vmatprep.subr.mxu0 0.0
    %1219 = vmatpush1.msra.mxu0 0.0
    %1220 = vmatprep.subr.mxu0 0.0
    %1221 = vmatpush1.msra.mxu0 0.0
    %1222 = vmatprep.subr.mxu0 0.0
    %1223 = vmatpush1.msra.mxu0 0.0
    %1224 = vmatprep.mubr.f32.mxu0 0.0
    %1225 = vmatmul.mubr.f32.gmra.mrb[0].mxu0 %v1158
    %v1226 = vpop.f32.mrb[0].mxu0
    %v1227 = vadd.f32 0.0, %v1226
    %v1228 = vpop.f32.mrb[0].mxu0
    %v1229 = vadd.f32 0.0, %v1228
    %1230 = vdwg.mxu0
    %1231 = vmatprep.subr.mxu0 %v45
    %1232 = vmatpush1.msra.mxu0 %v44
    %1233 = vmatprep.subr.mxu0 %v49
    %1234 = vmatpush1.msra.mxu0 %v48
    %1235 = vmatprep.subr.mxu0 %v53
    %1236 = vmatpush1.msra.mxu0 %v52
    %1237 = vmatprep.subr.mxu0 %v57
    %1238 = vmatpush1.msra.mxu0 %v56
    %1239 = vmatprep.subr.mxu0 0.0
    %1240 = vmatpush1.msra.mxu0 0.0
    %1241 = vmatprep.subr.mxu0 0.0
    %1242 = vmatpush1.msra.mxu0 0.0
    %1243 = vmatprep.subr.mxu0 0.0
    %1244 = vmatpush1.msra.mxu0 0.0
    %1245 = vmatprep.subr.mxu0 0.0
    %1246 = vmatpush1.msra.mxu0 0.0
    %1247 = vmatprep.subr.mxu0 0.0
    %1248 = vmatpush1.msra.mxu0 0.0
    %1249 = vmatprep.subr.mxu0 0.0
    %1250 = vmatpush1.msra.mxu0 0.0
    %1251 = vmatprep.subr.mxu0 0.0
    %1252 = vmatpush1.msra.mxu0 0.0
    %1253 = vmatprep.subr.mxu0 0.0
    %1254 = vmatpush1.msra.mxu0 0.0
    %1255 = vmatprep.subr.mxu0 0.0
    %1256 = vmatpush1.msra.mxu0 0.0
    %1257 = vmatprep.subr.mxu0 0.0
    %1258 = vmatpush1.msra.mxu0 0.0
    %1259 = vmatprep.subr.mxu0 0.0
    %1260 = vmatpush1.msra.mxu0 0.0
    %1261 = vmatprep.subr.mxu0 0.0
    %1262 = vmatpush1.msra.mxu0 0.0
    %1263 = vmatprep.subr.mxu0 0.0
    %1264 = vmatpush1.msra.mxu0 0.0
    %1265 = vmatprep.subr.mxu0 0.0
    %1266 = vmatpush1.msra.mxu0 0.0
    %1267 = vmatprep.subr.mxu0 0.0
    %1268 = vmatpush1.msra.mxu0 0.0
    %1269 = vmatprep.subr.mxu0 0.0
    %1270 = vmatpush1.msra.mxu0 0.0
    %1271 = vmatprep.subr.mxu0 0.0
    %1272 = vmatpush1.msra.mxu0 0.0
    %1273 = vmatprep.subr.mxu0 0.0
    %1274 = vmatpush1.msra.mxu0 0.0
    %1275 = vmatprep.subr.mxu0 0.0
    %1276 = vmatpush1.msra.mxu0 0.0
    %1277 = vmatprep.subr.mxu0 0.0
    %1278 = vmatpush1.msra.mxu0 0.0
    %1279 = vmatprep.subr.mxu0 0.0
    %1280 = vmatpush1.msra.mxu0 0.0
    %1281 = vmatprep.subr.mxu0 0.0
    %1282 = vmatpush1.msra.mxu0 0.0
    %1283 = vmatprep.subr.mxu0 0.0
    %1284 = vmatpush1.msra.mxu0 0.0
    %1285 = vmatprep.subr.mxu0 0.0
    %1286 = vmatpush1.msra.mxu0 0.0
    %1287 = vmatprep.subr.mxu0 0.0
    %1288 = vmatpush1.msra.mxu0 0.0
    %1289 = vmatprep.subr.mxu0 0.0
    %1290 = vmatpush1.msra.mxu0 0.0
    %1291 = vmatprep.subr.mxu0 0.0
    %1292 = vmatpush1.msra.mxu0 0.0
    %1293 = vmatprep.subr.mxu0 0.0
    %1294 = vmatpush1.msra.mxu0 0.0
    %1295 = vmatprep.mubr.f32.mxu0 0.0
    %1296 = vmatmul.mubr.f32.gmra.mrb[0].mxu0 %v1158
    %v1297 = vpop.f32.mrb[0].mxu0
    %v1298 = vadd.f32 0.0, %v1297
    %v1299 = vpop.f32.mrb[0].mxu0
    %v1300 = vadd.f32 0.0, %v1299
    %1301 = vdwg.mxu0
    %v1306 = vrot.slane %v1227, 3
    %v1307 = vrot.slane %v1229, 3
    %v1308 = vrot.slane %v1298, 3
    %v1309 = vrot.slane %v1300, 3
    %v1314 = vadd.f32 %v153, %v1306
    %v1315 = vadd.f32 %v155, %v1307
    %v1316 = vadd.f32 %v224, %v1308
    %v1317 = vadd.f32 %v226, %v1309
    %v1318 = vxor.u32 %v1314, 2147483648
    %v1319 = vmul.f32 %v1318, 1.442695
    %v1320 = vpow.pop %v1319
    %v1321 = vadd.f32 %v1320, 1.0
    %v1322 = vrcp.pop %v1321
    %v1323 = vmul.f32 1.0, %v1322
    %v1324 = vxor.u32 %v1315, 2147483648
    %v1325 = vmul.f32 %v1324, 1.442695
    %v1326 = vpow.pop %v1325
    %v1327 = vadd.f32 %v1326, 1.0
    %v1328 = vrcp.pop %v1327
    %v1329 = vmul.f32 1.0, %v1328
    %v1330 = vtanh.pop %v1316
    %v1331 = vxor.u32 %v1317, 2147483648
    %v1332 = vmul.f32 %v1331, 1.442695
    %v1333 = vpow.pop %v1332
    %v1334 = vadd.f32 %v1333, 1.0
    %v1335 = vrcp.pop %v1334
    %v1336 = vmul.f32 1.0, %v1335
    %v1338 = vrot.slane %v1153, 7
    %v1340 = vmul.f32 %v1329, %v1338
    %v1341 = vmul.f32 %v1323, %v1330
    %v1342 = vadd.f32 %v1340, %v1341
    %v1343 = vtanh.pop %v1342
    %v1344 = vmul.f32 %v1336, %v1343
    %v1346 = vrot.slane %v1344, 5
    %v1347 = vsel %vm82, %v1346, 0
    %1349 = vmatprep.subr.mxu0 %v43
    %1350 = vmatpush1.msra.mxu0 %v42
    %1351 = vmatprep.subr.mxu0 %v47
    %1352 = vmatpush1.msra.mxu0 %v46
    %1353 = vmatprep.subr.mxu0 %v51
    %1354 = vmatpush1.msra.mxu0 %v50
    %1355 = vmatprep.subr.mxu0 %v55
    %1356 = vmatpush1.msra.mxu0 %v54
    %1357 = vmatprep.subr.mxu0 0.0
    %1358 = vmatpush1.msra.mxu0 0.0
    %1359 = vmatprep.subr.mxu0 0.0
    %1360 = vmatpush1.msra.mxu0 0.0
    %1361 = vmatprep.subr.mxu0 0.0
    %1362 = vmatpush1.msra.mxu0 0.0
    %1363 = vmatprep.subr.mxu0 0.0
    %1364 = vmatpush1.msra.mxu0 0.0
    %1365 = vmatprep.subr.mxu0 0.0
    %1366 = vmatpush1.msra.mxu0 0.0
    %1367 = vmatprep.subr.mxu0 0.0
    %1368 = vmatpush1.msra.mxu0 0.0
    %1369 = vmatprep.subr.mxu0 0.0
    %1370 = vmatpush1.msra.mxu0 0.0
    %1371 = vmatprep.subr.mxu0 0.0
    %1372 = vmatpush1.msra.mxu0 0.0
    %1373 = vmatprep.subr.mxu0 0.0
    %1374 = vmatpush1.msra.mxu0 0.0
    %1375 = vmatprep.subr.mxu0 0.0
    %1376 = vmatpush1.msra.mxu0 0.0
    %1377 = vmatprep.subr.mxu0 0.0
    %1378 = vmatpush1.msra.mxu0 0.0
    %1379 = vmatprep.subr.mxu0 0.0
    %1380 = vmatpush1.msra.mxu0 0.0
    %1381 = vmatprep.subr.mxu0 0.0
    %1382 = vmatpush1.msra.mxu0 0.0
    %1383 = vmatprep.subr.mxu0 0.0
    %1384 = vmatpush1.msra.mxu0 0.0
    %1385 = vmatprep.subr.mxu0 0.0
    %1386 = vmatpush1.msra.mxu0 0.0
    %1387 = vmatprep.subr.mxu0 0.0
    %1388 = vmatpush1.msra.mxu0 0.0
    %1389 = vmatprep.subr.mxu0 0.0
    %1390 = vmatpush1.msra.mxu0 0.0
    %1391 = vmatprep.subr.mxu0 0.0
    %1392 = vmatpush1.msra.mxu0 0.0
    %1393 = vmatprep.subr.mxu0 0.0
    %1394 = vmatpush1.msra.mxu0 0.0
    %1395 = vmatprep.subr.mxu0 0.0
    %1396 = vmatpush1.msra.mxu0 0.0
    %1397 = vmatprep.subr.mxu0 0.0
    %1398 = vmatpush1.msra.mxu0 0.0
    %1399 = vmatprep.subr.mxu0 0.0
    %1400 = vmatpush1.msra.mxu0 0.0
    %1401 = vmatprep.subr.mxu0 0.0
    %1402 = vmatpush1.msra.mxu0 0.0
    %1403 = vmatprep.subr.mxu0 0.0
    %1404 = vmatpush1.msra.mxu0 0.0
    %1405 = vmatprep.subr.mxu0 0.0
    %1406 = vmatpush1.msra.mxu0 0.0
    %1407 = vmatprep.subr.mxu0 0.0
    %1408 = vmatpush1.msra.mxu0 0.0
    %1409 = vmatprep.subr.mxu0 0.0
    %1410 = vmatpush1.msra.mxu0 0.0
    %1411 = vmatprep.subr.mxu0 0.0
    %1412 = vmatpush1.msra.mxu0 0.0
    %1413 = vmatprep.mubr.f32.mxu0 0.0
    %1414 = vmatmul.mubr.f32.gmra.mrb[0].mxu0 %v1347
    %v1415 = vpop.f32.mrb[0].mxu0
    %v1416 = vadd.f32 0.0, %v1415
    %v1417 = vpop.f32.mrb[0].mxu0
    %v1418 = vadd.f32 0.0, %v1417
    %1419 = vdwg.mxu0
    %1420 = vmatprep.subr.mxu0 %v45
    %1421 = vmatpush1.msra.mxu0 %v44
    %1422 = vmatprep.subr.mxu0 %v49
    %1423 = vmatpush1.msra.mxu0 %v48
    %1424 = vmatprep.subr.mxu0 %v53
    %1425 = vmatpush1.msra.mxu0 %v52
    %1426 = vmatprep.subr.mxu0 %v57
    %1427 = vmatpush1.msra.mxu0 %v56
    %1428 = vmatprep.subr.mxu0 0.0
    %1429 = vmatpush1.msra.mxu0 0.0
    %1430 = vmatprep.subr.mxu0 0.0
    %1431 = vmatpush1.msra.mxu0 0.0
    %1432 = vmatprep.subr.mxu0 0.0
    %1433 = vmatpush1.msra.mxu0 0.0
    %1434 = vmatprep.subr.mxu0 0.0
    %1435 = vmatpush1.msra.mxu0 0.0
    %1436 = vmatprep.subr.mxu0 0.0
    %1437 = vmatpush1.msra.mxu0 0.0
    %1438 = vmatprep.subr.mxu0 0.0
    %1439 = vmatpush1.msra.mxu0 0.0
    %1440 = vmatprep.subr.mxu0 0.0
    %1441 = vmatpush1.msra.mxu0 0.0
    %1442 = vmatprep.subr.mxu0 0.0
    %1443 = vmatpush1.msra.mxu0 0.0
    %1444 = vmatprep.subr.mxu0 0.0
    %1445 = vmatpush1.msra.mxu0 0.0
    %1446 = vmatprep.subr.mxu0 0.0
    %1447 = vmatpush1.msra.mxu0 0.0
    %1448 = vmatprep.subr.mxu0 0.0
    %1449 = vmatpush1.msra.mxu0 0.0
    %1450 = vmatprep.subr.mxu0 0.0
    %1451 = vmatpush1.msra.mxu0 0.0
    %1452 = vmatprep.subr.mxu0 0.0
    %1453 = vmatpush1.msra.mxu0 0.0
    %1454 = vmatprep.subr.mxu0 0.0
    %1455 = vmatpush1.msra.mxu0 0.0
    %1456 = vmatprep.subr.mxu0 0.0
    %1457 = vmatpush1.msra.mxu0 0.0
    %1458 = vmatprep.subr.mxu0 0.0
    %1459 = vmatpush1.msra.mxu0 0.0
    %1460 = vmatprep.subr.mxu0 0.0
    %1461 = vmatpush1.msra.mxu0 0.0
    %1462 = vmatprep.subr.mxu0 0.0
    %1463 = vmatpush1.msra.mxu0 0.0
    %1464 = vmatprep.subr.mxu0 0.0
    %1465 = vmatpush1.msra.mxu0 0.0
    %1466 = vmatprep.subr.mxu0 0.0
    %1467 = vmatpush1.msra.mxu0 0.0
    %1468 = vmatprep.subr.mxu0 0.0
    %1469 = vmatpush1.msra.mxu0 0.0
    %1470 = vmatprep.subr.mxu0 0.0
    %1471 = vmatpush1.msra.mxu0 0.0
    %1472 = vmatprep.subr.mxu0 0.0
    %1473 = vmatpush1.msra.mxu0 0.0
    %1474 = vmatprep.subr.mxu0 0.0
    %1475 = vmatpush1.msra.mxu0 0.0
    %1476 = vmatprep.subr.mxu0 0.0
    %1477 = vmatpush1.msra.mxu0 0.0
    %1478 = vmatprep.subr.mxu0 0.0
    %1479 = vmatpush1.msra.mxu0 0.0
    %1480 = vmatprep.subr.mxu0 0.0
    %1481 = vmatpush1.msra.mxu0 0.0
    %1482 = vmatprep.subr.mxu0 0.0
    %1483 = vmatpush1.msra.mxu0 0.0
    %1484 = vmatprep.mubr.f32.mxu0 0.0
    %1485 = vmatmul.mubr.f32.gmra.mrb[0].mxu0 %v1347
    %v1486 = vpop.f32.mrb[0].mxu0
    %v1487 = vadd.f32 0.0, %v1486
    %v1488 = vpop.f32.mrb[0].mxu0
    %v1489 = vadd.f32 0.0, %v1488
    %1490 = vdwg.mxu0
    %v1495 = vrot.slane %v1416, 2
    %v1496 = vrot.slane %v1418, 2
    %v1497 = vrot.slane %v1487, 2
    %v1498 = vrot.slane %v1489, 2
    %v1503 = vadd.f32 %v153, %v1495
    %v1504 = vadd.f32 %v155, %v1496
    %v1505 = vadd.f32 %v224, %v1497
    %v1506 = vadd.f32 %v226, %v1498
    %v1507 = vxor.u32 %v1503, 2147483648
    %v1508 = vmul.f32 %v1507, 1.442695
    %v1509 = vpow.pop %v1508
    %v1510 = vadd.f32 %v1509, 1.0
    %v1511 = vrcp.pop %v1510
    %v1512 = vmul.f32 1.0, %v1511
    %v1513 = vxor.u32 %v1504, 2147483648
    %v1514 = vmul.f32 %v1513, 1.442695
    %v1515 = vpow.pop %v1514
    %v1516 = vadd.f32 %v1515, 1.0
    %v1517 = vrcp.pop %v1516
    %v1518 = vmul.f32 1.0, %v1517
    %v1519 = vtanh.pop %v1505
    %v1520 = vxor.u32 %v1506, 2147483648
    %v1521 = vmul.f32 %v1520, 1.442695
    %v1522 = vpow.pop %v1521
    %v1523 = vadd.f32 %v1522, 1.0
    %v1524 = vrcp.pop %v1523
    %v1525 = vmul.f32 1.0, %v1524
    %v1527 = vrot.slane %v1342, 7
    %v1529 = vmul.f32 %v1518, %v1527
    %v1530 = vmul.f32 %v1512, %v1519
    %v1531 = vadd.f32 %v1529, %v1530
    %v1532 = vtanh.pop %v1531
    %v1533 = vmul.f32 %v1525, %v1532
    %v1535 = vrot.slane %v1533, 6
    %v1536 = vsel %vm82, %v1535, 0
    %1538 = vmatprep.subr.mxu0 %v43
    %1539 = vmatpush1.msra.mxu0 %v42
    %1540 = vmatprep.subr.mxu0 %v47
    %1541 = vmatpush1.msra.mxu0 %v46
    %1542 = vmatprep.subr.mxu0 %v51
    %1543 = vmatpush1.msra.mxu0 %v50
    %1544 = vmatprep.subr.mxu0 %v55
    %1545 = vmatpush1.msra.mxu0 %v54
    %1546 = vmatprep.subr.mxu0 0.0
    %1547 = vmatpush1.msra.mxu0 0.0
    %1548 = vmatprep.subr.mxu0 0.0
    %1549 = vmatpush1.msra.mxu0 0.0
    %1550 = vmatprep.subr.mxu0 0.0
    %1551 = vmatpush1.msra.mxu0 0.0
    %1552 = vmatprep.subr.mxu0 0.0
    %1553 = vmatpush1.msra.mxu0 0.0
    %1554 = vmatprep.subr.mxu0 0.0
    %1555 = vmatpush1.msra.mxu0 0.0
    %1556 = vmatprep.subr.mxu0 0.0
    %1557 = vmatpush1.msra.mxu0 0.0
    %1558 = vmatprep.subr.mxu0 0.0
    %1559 = vmatpush1.msra.mxu0 0.0
    %1560 = vmatprep.subr.mxu0 0.0
    %1561 = vmatpush1.msra.mxu0 0.0
    %1562 = vmatprep.subr.mxu0 0.0
    %1563 = vmatpush1.msra.mxu0 0.0
    %1564 = vmatprep.subr.mxu0 0.0
    %1565 = vmatpush1.msra.mxu0 0.0
    %1566 = vmatprep.subr.mxu0 0.0
    %1567 = vmatpush1.msra.mxu0 0.0
    %1568 = vmatprep.subr.mxu0 0.0
    %1569 = vmatpush1.msra.mxu0 0.0
    %1570 = vmatprep.subr.mxu0 0.0
    %1571 = vmatpush1.msra.mxu0 0.0
    %1572 = vmatprep.subr.mxu0 0.0
    %1573 = vmatpush1.msra.mxu0 0.0
    %1574 = vmatprep.subr.mxu0 0.0
    %1575 = vmatpush1.msra.mxu0 0.0
    %1576 = vmatprep.subr.mxu0 0.0
    %1577 = vmatpush1.msra.mxu0 0.0
    %1578 = vmatprep.subr.mxu0 0.0
    %1579 = vmatpush1.msra.mxu0 0.0
    %1580 = vmatprep.subr.mxu0 0.0
    %1581 = vmatpush1.msra.mxu0 0.0
    %1582 = vmatprep.subr.mxu0 0.0
    %1583 = vmatpush1.msra.mxu0 0.0
    %1584 = vmatprep.subr.mxu0 0.0
    %1585 = vmatpush1.msra.mxu0 0.0
    %1586 = vmatprep.subr.mxu0 0.0
    %1587 = vmatpush1.msra.mxu0 0.0
    %1588 = vmatprep.subr.mxu0 0.0
    %1589 = vmatpush1.msra.mxu0 0.0
    %1590 = vmatprep.subr.mxu0 0.0
    %1591 = vmatpush1.msra.mxu0 0.0
    %1592 = vmatprep.subr.mxu0 0.0
    %1593 = vmatpush1.msra.mxu0 0.0
    %1594 = vmatprep.subr.mxu0 0.0
    %1595 = vmatpush1.msra.mxu0 0.0
    %1596 = vmatprep.subr.mxu0 0.0
    %1597 = vmatpush1.msra.mxu0 0.0
    %1598 = vmatprep.subr.mxu0 0.0
    %1599 = vmatpush1.msra.mxu0 0.0
    %1600 = vmatprep.subr.mxu0 0.0
    %1601 = vmatpush1.msra.mxu0 0.0
    %1602 = vmatprep.mubr.f32.mxu0 0.0
    %1603 = vmatmul.mubr.f32.gmra.mrb[0].mxu0 %v1536
    %v1604 = vpop.f32.mrb[0].mxu0
    %v1605 = vadd.f32 0.0, %v1604
    %v1606 = vpop.f32.mrb[0].mxu0
    %v1607 = vadd.f32 0.0, %v1606
    %1608 = vdwg.mxu0
    %1609 = vmatprep.subr.mxu0 %v45
    %1610 = vmatpush1.msra.mxu0 %v44
    %1611 = vmatprep.subr.mxu0 %v49
    %1612 = vmatpush1.msra.mxu0 %v48
    %1613 = vmatprep.subr.mxu0 %v53
    %1614 = vmatpush1.msra.mxu0 %v52
    %1615 = vmatprep.subr.mxu0 %v57
    %1616 = vmatpush1.msra.mxu0 %v56
    %1617 = vmatprep.subr.mxu0 0.0
    %1618 = vmatpush1.msra.mxu0 0.0
    %1619 = vmatprep.subr.mxu0 0.0
    %1620 = vmatpush1.msra.mxu0 0.0
    %1621 = vmatprep.subr.mxu0 0.0
    %1622 = vmatpush1.msra.mxu0 0.0
    %1623 = vmatprep.subr.mxu0 0.0
    %1624 = vmatpush1.msra.mxu0 0.0
    %1625 = vmatprep.subr.mxu0 0.0
    %1626 = vmatpush1.msra.mxu0 0.0
    %1627 = vmatprep.subr.mxu0 0.0
    %1628 = vmatpush1.msra.mxu0 0.0
    %1629 = vmatprep.subr.mxu0 0.0
    %1630 = vmatpush1.msra.mxu0 0.0
    %1631 = vmatprep.subr.mxu0 0.0
    %1632 = vmatpush1.msra.mxu0 0.0
    %1633 = vmatprep.subr.mxu0 0.0
    %1634 = vmatpush1.msra.mxu0 0.0
    %1635 = vmatprep.subr.mxu0 0.0
    %1636 = vmatpush1.msra.mxu0 0.0
    %1637 = vmatprep.subr.mxu0 0.0
    %1638 = vmatpush1.msra.mxu0 0.0
    %1639 = vmatprep.subr.mxu0 0.0
    %1640 = vmatpush1.msra.mxu0 0.0
    %1641 = vmatprep.subr.mxu0 0.0
    %1642 = vmatpush1.msra.mxu0 0.0
    %1643 = vmatprep.subr.mxu0 0.0
    %1644 = vmatpush1.msra.mxu0 0.0
    %1645 = vmatprep.subr.mxu0 0.0
    %1646 = vmatpush1.msra.mxu0 0.0
    %1647 = vmatprep.subr.mxu0 0.0
    %1648 = vmatpush1.msra.mxu0 0.0
    %1649 = vmatprep.subr.mxu0 0.0
    %1650 = vmatpush1.msra.mxu0 0.0
    %1651 = vmatprep.subr.mxu0 0.0
    %1652 = vmatpush1.msra.mxu0 0.0
    %1653 = vmatprep.subr.mxu0 0.0
    %1654 = vmatpush1.msra.mxu0 0.0
    %1655 = vmatprep.subr.mxu0 0.0
    %1656 = vmatpush1.msra.mxu0 0.0
    %1657 = vmatprep.subr.mxu0 0.0
    %1658 = vmatpush1.msra.mxu0 0.0
    %1659 = vmatprep.subr.mxu0 0.0
    %1660 = vmatpush1.msra.mxu0 0.0
    %1661 = vmatprep.subr.mxu0 0.0
    %1662 = vmatpush1.msra.mxu0 0.0
    %1663 = vmatprep.subr.mxu0 0.0
    %1664 = vmatpush1.msra.mxu0 0.0
    %1665 = vmatprep.subr.mxu0 0.0
    %1666 = vmatpush1.msra.mxu0 0.0
    %1667 = vmatprep.subr.mxu0 0.0
    %1668 = vmatpush1.msra.mxu0 0.0
    %1669 = vmatprep.subr.mxu0 0.0
    %1670 = vmatpush1.msra.mxu0 0.0
    %1671 = vmatprep.subr.mxu0 0.0
    %1672 = vmatpush1.msra.mxu0 0.0
    %1673 = vmatprep.mubr.f32.mxu0 0.0
    %1674 = vmatmul.mubr.f32.gmra.mrb[0].mxu0 %v1536
    %v1675 = vpop.f32.mrb[0].mxu0
    %v1676 = vadd.f32 0.0, %v1675
    %v1677 = vpop.f32.mrb[0].mxu0
    %v1678 = vadd.f32 0.0, %v1677
    %1679 = vdwg.mxu0
    %v1684 = vrot.slane %v1605, 1
    %v1685 = vrot.slane %v1607, 1
    %v1686 = vrot.slane %v1676, 1
    %v1687 = vrot.slane %v1678, 1
    %v1692 = vadd.f32 %v153, %v1684
    %v1693 = vadd.f32 %v155, %v1685
    %v1694 = vadd.f32 %v224, %v1686
    %v1695 = vadd.f32 %v226, %v1687
    %v1696 = vxor.u32 %v1692, 2147483648
    %v1697 = vmul.f32 %v1696, 1.442695
    %v1698 = vpow.pop %v1697
    %v1699 = vadd.f32 %v1698, 1.0
    %v1700 = vrcp.pop %v1699
    %v1701 = vmul.f32 1.0, %v1700
    %v1702 = vxor.u32 %v1693, 2147483648
    %v1703 = vmul.f32 %v1702, 1.442695
    %v1704 = vpow.pop %v1703
    %v1705 = vadd.f32 %v1704, 1.0
    %v1706 = vrcp.pop %v1705
    %v1707 = vmul.f32 1.0, %v1706
    %v1708 = vtanh.pop %v1694
    %v1709 = vxor.u32 %v1695, 2147483648
    %v1710 = vmul.f32 %v1709, 1.442695
    %v1711 = vpow.pop %v1710
    %v1712 = vadd.f32 %v1711, 1.0
    %v1713 = vrcp.pop %v1712
    %v1714 = vmul.f32 1.0, %v1713
    %v1716 = vrot.slane %v1531, 7
    %v1718 = vmul.f32 %v1707, %v1716
    %v1719 = vmul.f32 %v1701, %v1708
    %v1720 = vadd.f32 %v1718, %v1719
    %v1721 = vtanh.pop %v1720
    %v1722 = vmul.f32 %v1714, %v1721
    %vm1723 = vcmask 1040384
    %v1724 = vsel %vm1723, %v400, %v588
    %vm1725 = vcmask 1041408
    %v1726 = vsel %vm1725, %v1724, %v777
    %vm1727 = vcmask 1042432
    %v1728 = vsel %vm1727, %v1726, %v966
    %vm1729 = vcmask 1043456
    %v1730 = vsel %vm1729, %v1728, %v1155
    %vm1731 = vcmask 1044480
    %v1732 = vsel %vm1731, %v1730, %v1344
    %vm1733 = vcmask 1045504
    %v1734 = vsel %vm1733, %v1732, %v1533
    %vm1735 = vcmask 1046528
    %v1736 = vsel %vm1735, %v1734, %v1722
    %v1737 = vld [vmem:[#allocation2 + $0x120] sm:$0xff]
    %v1738 = vld [vmem:[#allocation2 + $0x140] sm:$0xff]
    %v1739 = vld [vmem:[#allocation2 + $0x160] sm:$0xff]
    %v1740 = vld [vmem:[#allocation2 + $0x180] sm:$0xff]
    %v1741 = vld [vmem:[#allocation2 + $0x1a0] ss:$0 sm:$0xff]
    %v1743 = vsel %vm82, %v1736, 0
    %1745 = vmatprep.subr.mxu0 0.0
    %1746 = vmatpush1.msra.mxu0 %v1737
    %1747 = vmatprep.subr.mxu0 0.0
    %1748 = vmatpush1.msra.mxu0 %v1738
    %1749 = vmatprep.subr.mxu0 0.0
    %1750 = vmatpush1.msra.mxu0 %v1739
    %1751 = vmatprep.subr.mxu0 0.0
    %1752 = vmatpush1.msra.mxu0 %v1740
    %1753 = vmatprep.subr.mxu0 0.0
    %1754 = vmatpush1.msra.mxu0 0.0
    %1755 = vmatprep.subr.mxu0 0.0
    %1756 = vmatpush1.msra.mxu0 0.0
    %1757 = vmatprep.subr.mxu0 0.0
    %1758 = vmatpush1.msra.mxu0 0.0
    %1759 = vmatprep.subr.mxu0 0.0
    %1760 = vmatpush1.msra.mxu0 0.0
    %1761 = vmatprep.subr.mxu0 0.0
    %1762 = vmatpush1.msra.mxu0 0.0
    %1763 = vmatprep.subr.mxu0 0.0
    %1764 = vmatpush1.msra.mxu0 0.0
    %1765 = vmatprep.subr.mxu0 0.0
    %1766 = vmatpush1.msra.mxu0 0.0
    %1767 = vmatprep.subr.mxu0 0.0
    %1768 = vmatpush1.msra.mxu0 0.0
    %1769 = vmatprep.subr.mxu0 0.0
    %1770 = vmatpush1.msra.mxu0 0.0
    %1771 = vmatprep.subr.mxu0 0.0
    %1772 = vmatpush1.msra.mxu0 0.0
    %1773 = vmatprep.subr.mxu0 0.0
    %1774 = vmatpush1.msra.mxu0 0.0
    %1775 = vmatprep.subr.mxu0 0.0
    %1776 = vmatpush1.msra.mxu0 0.0
    %1777 = vmatprep.subr.mxu0 0.0
    %1778 = vmatpush1.msra.mxu0 0.0
    %1779 = vmatprep.subr.mxu0 0.0
    %1780 = vmatpush1.msra.mxu0 0.0
    %1781 = vmatprep.subr.mxu0 0.0
    %1782 = vmatpush1.msra.mxu0 0.0
    %1783 = vmatprep.subr.mxu0 0.0
    %1784 = vmatpush1.msra.mxu0 0.0
    %1785 = vmatprep.subr.mxu0 0.0
    %1786 = vmatpush1.msra.mxu0 0.0
    %1787 = vmatprep.subr.mxu0 0.0
    %1788 = vmatpush1.msra.mxu0 0.0
    %1789 = vmatprep.subr.mxu0 0.0
    %1790 = vmatpush1.msra.mxu0 0.0
    %1791 = vmatprep.subr.mxu0 0.0
    %1792 = vmatpush1.msra.mxu0 0.0
    %1793 = vmatprep.subr.mxu0 0.0
    %1794 = vmatpush1.msra.mxu0 0.0
    %1795 = vmatprep.subr.mxu0 0.0
    %1796 = vmatpush1.msra.mxu0 0.0
    %1797 = vmatprep.subr.mxu0 0.0
    %1798 = vmatpush1.msra.mxu0 0.0
    %1799 = vmatprep.subr.mxu0 0.0
    %1800 = vmatpush1.msra.mxu0 0.0
    %1801 = vmatprep.subr.mxu0 0.0
    %1802 = vmatpush1.msra.mxu0 0.0
    %1803 = vmatprep.subr.mxu0 0.0
    %1804 = vmatpush1.msra.mxu0 0.0
    %1805 = vmatprep.subr.mxu0 0.0
    %1806 = vmatpush1.msra.mxu0 0.0
    %1807 = vmatprep.subr.mxu0 0.0
    %1808 = vmatpush1.msra.mxu0 0.0
    %1809 = vmatprep.mubr.f32.mxu0 0.0
    %1810 = vmatmul.mubr.f32.gmra.mrb[0].mxu0 %v1743
    %v1811 = vpop.f32.mrb[0].mxu0
    %v1812 = vadd.f32 %v1741, %v1811
    %v1813 = vpop.f32.mrb[0].mxu0
    %1814 = vdwg.mxu0
    %v1815 = vlaneseq
    %v1816 = vand.u32 %v1815, 127
    %vm1817 = vcmp.lt.s32.totalorder %v1816, 8
    %v1818 = vsel %vm1817, 1, 0
    %vm1819 = vcmp.eq.s32.totalorder %v1818, 1
    %v1820 = vsel %vm1819, %v1812, -1e+30
    %1821 = vmax.xlane.f32.xlu0 %v1820
    %v1822 = vpop.xlane.xlu0 %1821
    %v1823 = vsub.f32 %v1820, %v1822
    %v1824 = vmul.f32 %v1823, 1.442695
    %v1825 = vpow.pop %v1824
    %1826 = vadd.xlane.f32.xlu0 %v1825
    %v1827 = vpop.xlane.xlu0 %1826
    %v1828 = vlog2.pop %v1827
    %v1829 = vmul.f32 %v1828, 0.6931472
    %v1830 = vadd.f32 %v1822, %v1829
    %v1831 = vsub.f32 %v1820, %v1830
    %v1832 = vsel %vm1819, %v1831, 0.0
    %1833 = vst [vmem:[#allocation5] sm:$0xff] %v1832
    // Predicated region
    $region14: #{lstm_tagger_forward.1} parent=1 // pred_check
      _
    $region15: #{lstm_tagger_forward.1} parent=1 // pred_check_branch
      %1835 = sbr.rel (0) target = $region17
    $region16: #{lstm_tagger_forward.1} parent=1 // pred_region
      %s1837 = ssub.s32 128, 128
      %1838 = vsyncadd [#allocation4], %s1837
      %s1840 = sshll.u32 [#allocation5], 4
      %s1841 = int_to_ptr.vmem [resolvable:$true] %s1840
      %1843 = dma.vmem_to_hbm [thread:$0]  %s1841, 128, %s2, [#allocation4]
    $region17: #{lstm_tagger_forward.1} parent=1 // pred_fallthru
      _
    // Predicated region
    $region18: #{lstm_tagger_forward.1} parent=1 // pred_check
      _
    $region19: #{lstm_tagger_forward.1} parent=1 // pred_check_branch
      %1845 = sbr.rel (0) target = $region21
    $region20: #{lstm_tagger_forward.1} parent=1 // pred_region
      %1846 = dma.done [#allocation4], 128
    $region21: #{lstm_tagger_forward.1} parent=1 // pred_fallthru
      _
    %1847 = vsyncpa [#allocation3], 1
    %1848 = vsyncpa [#allocation4], 1

</llo_original>
